<compile_context>
chip_gen: v6e
topology: v6e:2x2x1
jax: 0.10.0
libtpu: 0.0.40
codegen_flags: <defaults>
</compile_context>

<pallas_src>
import functools
import math

import jax
import jax.numpy as jnp
import numpy as np
from jax.experimental import pallas as pl
from jax.experimental.pallas import tpu as pltpu

EPS = 1e-3  # BatchNorm2d(eps=0.001)


# ---------------------------------------------------------------------------
# Pallas kernels
# ---------------------------------------------------------------------------
def _conv_pool_stats_kernel(s2d_ref, w2_ref, b_ref, y_ref, stats_ref, *,
                            ho, wo, cin, cconv):
    """Per image: 3x3/s2 conv (as 2x2 conv over space-to-depth) + 2x2 max-pool
    + channel concat, plus per-image per-channel sum / sum-of-squares."""
    m1 = ho * wo
    k4 = 4 * cin

    # ---- conv: accumulate the four 2x2 taps on the MXU (bf16 in, f32 acc) ----
    acc = jnp.zeros((m1, cconv), jnp.float32)
    for t in range(4):
        ti, tj = divmod(t, 2)
        tap = s2d_ref[0, ti:ti + ho, tj:tj + wo, :]            # (ho, wo, 4cin) bf16
        tap = tap.reshape(m1, k4)
        acc = acc + jnp.dot(tap, w2_ref[t],
                            preferred_element_type=jnp.float32)
    conv = acc + b_ref[...]                                     # (m1, cconv) f32
    # (bias before batch-statistics BN cancels exactly; kept for fidelity)

    # ---- 2x2/s2 max-pool == max over the four space-to-depth phases ----
    core = s2d_ref[0, 1:1 + ho, 1:1 + wo, :].astype(jnp.float32).reshape(m1, k4)
    pool = jnp.maximum(
        jnp.maximum(core[:, 0 * cin:1 * cin], core[:, 1 * cin:2 * cin]),
        jnp.maximum(core[:, 2 * cin:3 * cin], core[:, 3 * cin:4 * cin]))

    y = jnp.concatenate([conv, pool], axis=1)                   # (m1, C) f32

    # ---- per-image BN statistics via ones-row MXU dots ----
    ones_row = jnp.ones((1, m1), jnp.float32)
    s = jnp.dot(ones_row, y, preferred_element_type=jnp.float32)        # (1, C)
    ss = jnp.dot(ones_row, y * y, preferred_element_type=jnp.float32)   # (1, C)

    y_ref[0] = y.astype(jnp.bfloat16)
    stats_ref[0] = jnp.concatenate([s, ss], axis=0)             # (2, C)


def _bn_relu_kernel(y_ref, st_ref, g_ref, b_ref, o_ref, *, inv_m, eps):
    """Training-mode BatchNorm (global batch stats) + ReLU on one (TM, L) tile.
    st/g/b are already laid out with the same lane pattern as y's last dim."""
    mean = st_ref[0:1, :] * inv_m
    var = st_ref[1:2, :] * inv_m - mean * mean                  # biased variance
    scale = g_ref[...] * jax.lax.rsqrt(var + eps)
    shift = b_ref[...] - mean * scale
    o_ref[...] = jnp.maximum(
        y_ref[...].astype(jnp.float32) * scale + shift, 0.0)


# ---------------------------------------------------------------------------
# Wrapper (boundary layout work in plain JAX, all heavy math in Pallas)
# ---------------------------------------------------------------------------
def _stride2_weight_to_s2d(w):
    """PyTorch (Cout, Cin, 3, 3) stride-2 conv weight -> (4, 4*Cin, Cout) weight
    of the equivalent stride-1 2x2 conv over the space-to-depth input."""
    cconv, cin = w.shape[0], w.shape[1]
    tap = ((0, 1), (1, 0), (1, 1))           # ki/kj -> (2x2 tap offset, phase)
    w2 = jnp.zeros((2, 2, 2, 2, cin, cconv), jnp.float32)  # [ti,tj,pr,pc,ci,co]
    for ki in range(3):
        ti, pr = tap[ki]
        for kj in range(3):
            tj, pc = tap[kj]
            w2 = w2.at[ti, tj, pr, pc].set(jnp.transpose(w[:, :, ki, kj]))
    return w2.reshape(4, 4 * cin, cconv)


def _pick_lane_dense_layout(M, C):
    """Find (R, L, TM) with M*C == R*L, L % C == 0, L % 128 == 0, TM | R.
    Returns None if no clean lane-dense factorization exists."""
    MC = M * C
    base = (C * 128) // math.gcd(C, 128)     # lcm(C, 128)
    if base > 4096 or MC % base != 0:
        return None
    L = base
    while L * 2 <= 1024 and MC % (L * 2) == 0:
        L *= 2
    R = MC // L
    if R <= 1024:
        return R, L, R
    d = 1024
    while d >= 8:
        if R % d == 0:
            return R, L, d
        d -= 8
    return None


def downsampler_block_forward(x_nchw, params):
    w, b = params["w"], params["b"]
    gamma, beta = params["g"], params["be"]

    N, cin, H, W = x_nchw.shape
    assert H % 2 == 0 and W % 2 == 0, "DownsamplerBlock requires even H, W"
    cconv = w.shape[0]
    C = cconv + cin
    Ho, Wo = H // 2, W // 2
    M = N * Ho * Wo

    # ---- boundary layout (once): NCHW -> NHWC -> space-to-depth ----------
    x = jnp.transpose(x_nchw, (0, 2, 3, 1))
    # s2d channel index = pr*2*cin + pc*cin + c, where (pr, pc) is the 2x2 phase
    s2d = x.reshape(N, Ho, 2, Wo, 2, cin)
    s2d = s2d.transpose(0, 1, 3, 2, 4, 5).reshape(N, Ho, Wo, 4 * cin)
    # top/left zero pad == the conv's padding=1 in original coordinates
    s2dp = jnp.pad(s2d, ((0, 0), (1, 0), (1, 0), (0, 0))).astype(jnp.bfloat16)

    w2 = _stride2_weight_to_s2d(w).astype(jnp.bfloat16)         # (4, 4cin, cconv)
    b2 = b.reshape(1, cconv).astype(jnp.float32)

    # ---- pass 1: fused conv + pool + concat + per-image BN statistics -----
    y_pre, stats = pl.pallas_call(
        functools.partial(_conv_pool_stats_kernel,
                          ho=Ho, wo=Wo, cin=cin, cconv=cconv),
        out_shape=(jax.ShapeDtypeStruct((N, Ho * Wo, C), jnp.bfloat16),
                   jax.ShapeDtypeStruct((N, 2, C), jnp.float32)),
        grid=(N,),
        in_specs=[
            pl.BlockSpec((1, Ho + 1, Wo + 1, 4 * cin), lambda n: (n, 0, 0, 0)),
            pl.BlockSpec((4, 4 * cin, cconv), lambda n: (0, 0, 0)),
            pl.BlockSpec((1, cconv), lambda n: (0, 0)),
        ],
        out_specs=(
            pl.BlockSpec((1, Ho * Wo, C), lambda n: (n, 0, 0)),
            pl.BlockSpec((1, 2, C), lambda n: (n, 0, 0)),
        ),
        compiler_params=pltpu.CompilerParams(
            dimension_semantics=("parallel",),       # per-image, no accumulator
            vmem_limit_bytes=64 * 1024 * 1024,
        ),
    )(s2dp, w2, b2)

    # tiny cross-image reduction of the per-image partial stats (2*C*N floats)
    st = jnp.sum(stats, axis=0)                                  # (2, C) f32
    gamma2 = gamma.reshape(1, C).astype(jnp.float32)
    beta2 = beta.reshape(1, C).astype(jnp.float32)

    # ---- pass 2: BN normalize + ReLU, lane-dense when possible ------------
    layout = _pick_lane_dense_layout(M, C)
    if layout is not None:
        R, L, TM = layout
        rep = L // C
        y2 = y_pre.reshape(R, L)                 # contiguous view, channel = lane % C
        st2 = jnp.tile(st, (1, rep))             # (2, L)
        g2 = jnp.tile(gamma2, (1, rep))          # (1, L)
        b2t = jnp.tile(beta2, (1, rep))          # (1, L)
        rows, lanes, rows_real = R, L, R
    else:
        TM = 512
        if M < TM:
            TM = max(8, ((M + 7) // 8) * 8)
        Mp = ((M + TM - 1) // TM) * TM
        y2 = y_pre.reshape(M, C)
        if Mp != M:
            # padded rows are junk but sliced off; stats already exclude them
            y2 = jnp.pad(y2, ((0, Mp - M), (0, 0)))
        st2, g2, b2t = st, gamma2, beta2
        rows, lanes, rows_real = Mp, C, M

    out_flat = pl.pallas_call(
        functools.partial(_bn_relu_kernel, inv_m=1.0 / M, eps=EPS),
        out_shape=jax.ShapeDtypeStruct((rows, lanes), jnp.float32),
        grid=(rows // TM,),
        in_specs=[
            pl.BlockSpec((TM, lanes), lambda i: (i, 0)),
            pl.BlockSpec((2, lanes), lambda i: (0, 0)),
            pl.BlockSpec((1, lanes), lambda i: (0, 0)),
            pl.BlockSpec((1, lanes), lambda i: (0, 0)),
        ],
        out_specs=pl.BlockSpec((TM, lanes), lambda i: (i, 0)),
        compiler_params=pltpu.CompilerParams(
            dimension_semantics=("parallel",),
            vmem_limit_bytes=64 * 1024 * 1024,
        ),
    )(y2, st2, g2, b2t)

    if layout is not None:
        out = out_flat.reshape(N, Ho, Wo, C)
    else:
        out = out_flat[:rows_real].reshape(N, Ho, Wo, C)
    # boundary: NHWC -> NCHW (once)
    return out.transpose(0, 3, 1, 2)


# ---------------------------------------------------------------------------
# Deterministic parameter init (shapes from the PyTorch module __init__)
# ---------------------------------------------------------------------------
def init_downsampler_params(key, ninput, noutput):
    k1, k2 = jax.random.split(key)
    cconv = noutput - ninput
    fan_in = ninput * 9
    w = jax.random.normal(k1, (cconv, ninput, 3, 3), jnp.float32) / np.sqrt(fan_in)
    b = 0.01 * jax.random.normal(k2, (cconv,), jnp.float32)
    return dict(w=w, b=b,
                g=jnp.ones((noutput,), jnp.float32),     # BN weight init
                be=jnp.zeros((noutput,), jnp.float32))   # BN bias init


# ---------------------------------------------------------------------------
# Pure-JAX reference (for the in-script correctness check)
# ---------------------------------------------------------------------------
def _reference_forward(x, params, eps=EPS):
    w, b, gamma, beta = params["w"], params["b"], params["g"], params["be"]
    conv = jax.lax.conv_general_dilated(
        x, w, window_strides=(2, 2), padding=((1, 1), (1, 1)),
        dimension_numbers=("NCHW", "OIHW", "NCHW"),
        precision=jax.lax.Precision.HIGHEST) + b[None, :, None, None]
    pool = jax.lax.reduce_window(x, -jnp.inf, jax.lax.max,
                                 (1, 1, 2, 2), (1, 1, 2, 2), "VALID")
    y = jnp.concatenate([conv, pool], axis=1)
    mean = jnp.mean(y, axis=(0, 2, 3), keepdims=True)
    var = jnp.mean((y - mean) ** 2, axis=(0, 2, 3), keepdims=True)
    yhat = (y - mean) * jax.lax.rsqrt(var + eps)
    return jnp.maximum(yhat * gamma[None, :, None, None]
                       + beta[None, :, None, None], 0.0)


# ---------------------------------------------------------------------------
if __name__ == "__main__":
    key = jax.random.PRNGKey(0)
    kx, kp = jax.random.split(key)

    N, ninput, H, W = 2, 4, 16, 16
    noutput = 16
    x = jax.random.normal(kx, (N, ninput, H, W), jnp.float32)
    params = init_downsampler_params(kp, ninput, noutput)

    fwd = jax.jit(downsampler_block_forward)
    out = fwd(x, params)
    jax.block_until_ready(out)

    assert out.shape == (N, noutput, H // 2, W // 2), out.shape

    ref = _reference_forward(x, params)
    np.testing.assert_allclose(np.asarray(out), np.asarray(ref),
                               rtol=1e-1, atol=1e-1)
    print("KERNEL_OK")
</pallas_src>

<mosaic_0001>
module attributes {stable_mosaic.version = 11 : i64} {
  func.func @_conv_pool_stats_kernel(%arg0: i32, %arg1: memref<1x9x9x16xbf16, #tpu.memory_space<vmem>>, %arg2: memref<4x16x12xbf16, #tpu.memory_space<vmem>>, %arg3: memref<1x12xf32, #tpu.memory_space<vmem>>, %arg4: memref<1x64x16xbf16, #tpu.memory_space<vmem>>, %arg5: memref<1x2x16xf32, #tpu.memory_space<vmem>>) attributes {dimension_semantics = [#tpu.dimension_semantics<parallel>], iteration_bounds = array<i64: 2>, scalar_prefetch = 0 : i64, scratch_operands = 0 : i64, tpu.core_type = #tpu.core_type<tc>, window_params = [{transform_indices = @transform_0, window_bounds = array<i64: 1, 9, 9, 16>}, {pipeline_mode = #tpu.pipeline_mode<synchronous>, transform_indices = @transform_1, window_bounds = array<i64: 4, 16, 12>}, {pipeline_mode = #tpu.pipeline_mode<synchronous>, transform_indices = @transform_2, window_bounds = array<i64: 1, 12>}, {transform_indices = @transform_3, window_bounds = array<i64: 1, 64, 16>}, {transform_indices = @transform_4, window_bounds = array<i64: 1, 2, 16>}]} {
    %cst = arith.constant 0.000000e+00 : f32
    %0 = vector.broadcast %cst : f32 to vector<64x12xf32>
    %c0 = arith.constant 0 : index
    %c0_0 = arith.constant 0 : index
    %c0_1 = arith.constant 0 : index
    %c0_2 = arith.constant 0 : index
    %1 = vector.load %arg1[%c0, %c0_0, %c0_1, %c0_2] : memref<1x9x9x16xbf16, #tpu.memory_space<vmem>>, vector<1x8x8x16xbf16>
    %2 = vector.shape_cast %1 : vector<1x8x8x16xbf16> to vector<8x8x16xbf16>
    %3 = vector.shape_cast %2 : vector<8x8x16xbf16> to vector<64x16xbf16>
    %c0_3 = arith.constant 0 : index
    %c0_4 = arith.constant 0 : index
    %c0_5 = arith.constant 0 : index
    %4 = vector.load %arg2[%c0_3, %c0_4, %c0_5] : memref<4x16x12xbf16, #tpu.memory_space<vmem>>, vector<1x16x12xbf16>
    %5 = vector.shape_cast %4 : vector<1x16x12xbf16> to vector<16x12xbf16>
    %cst_6 = arith.constant dense<0.000000e+00> : vector<64x12xf32>
    %6 = tpu.matmul %3, %5, %cst_6 {dimension_numbers = #tpu.dot_dimension_numbers<[1], [0], [0], [1], [0, 0, 1, 1], [], []>} : vector<64x16xbf16>, vector<16x12xbf16>, vector<64x12xf32> -> vector<64x12xf32>
    %7 = arith.addf %0, %6 : vector<64x12xf32>
    %c0_7 = arith.constant 0 : index
    %c0_8 = arith.constant 0 : index
    %c1 = arith.constant 1 : index
    %c0_9 = arith.constant 0 : index
    %8 = vector.load %arg1[%c0_7, %c0_8, %c1, %c0_9] : memref<1x9x9x16xbf16, #tpu.memory_space<vmem>>, vector<1x8x8x16xbf16>
    %9 = vector.shape_cast %8 : vector<1x8x8x16xbf16> to vector<8x8x16xbf16>
    %10 = vector.shape_cast %9 : vector<8x8x16xbf16> to vector<64x16xbf16>
    %c1_10 = arith.constant 1 : index
    %c0_11 = arith.constant 0 : index
    %c0_12 = arith.constant 0 : index
    %11 = vector.load %arg2[%c1_10, %c0_11, %c0_12] : memref<4x16x12xbf16, #tpu.memory_space<vmem>>, vector<1x16x12xbf16>
    %12 = vector.shape_cast %11 : vector<1x16x12xbf16> to vector<16x12xbf16>
    %cst_13 = arith.constant dense<0.000000e+00> : vector<64x12xf32>
    %13 = tpu.matmul %10, %12, %cst_13 {dimension_numbers = #tpu.dot_dimension_numbers<[1], [0], [0], [1], [0, 0, 1, 1], [], []>} : vector<64x16xbf16>, vector<16x12xbf16>, vector<64x12xf32> -> vector<64x12xf32>
    %14 = arith.addf %7, %13 : vector<64x12xf32>
    %c0_14 = arith.constant 0 : index
    %c1_15 = arith.constant 1 : index
    %c0_16 = arith.constant 0 : index
    %c0_17 = arith.constant 0 : index
    %15 = vector.load %arg1[%c0_14, %c1_15, %c0_16, %c0_17] : memref<1x9x9x16xbf16, #tpu.memory_space<vmem>>, vector<1x8x8x16xbf16>
    %16 = vector.shape_cast %15 : vector<1x8x8x16xbf16> to vector<8x8x16xbf16>
    %17 = vector.shape_cast %16 : vector<8x8x16xbf16> to vector<64x16xbf16>
    %c2 = arith.constant 2 : index
    %c0_18 = arith.constant 0 : index
    %c0_19 = arith.constant 0 : index
    %18 = vector.load %arg2[%c2, %c0_18, %c0_19] : memref<4x16x12xbf16, #tpu.memory_space<vmem>>, vector<1x16x12xbf16>
    %19 = vector.shape_cast %18 : vector<1x16x12xbf16> to vector<16x12xbf16>
    %cst_20 = arith.constant dense<0.000000e+00> : vector<64x12xf32>
    %20 = tpu.matmul %17, %19, %cst_20 {dimension_numbers = #tpu.dot_dimension_numbers<[1], [0], [0], [1], [0, 0, 1, 1], [], []>} : vector<64x16xbf16>, vector<16x12xbf16>, vector<64x12xf32> -> vector<64x12xf32>
    %21 = arith.addf %14, %20 : vector<64x12xf32>
    %c0_21 = arith.constant 0 : index
    %c1_22 = arith.constant 1 : index
    %c1_23 = arith.constant 1 : index
    %c0_24 = arith.constant 0 : index
    %22 = vector.load %arg1[%c0_21, %c1_22, %c1_23, %c0_24] : memref<1x9x9x16xbf16, #tpu.memory_space<vmem>>, vector<1x8x8x16xbf16>
    %23 = vector.shape_cast %22 : vector<1x8x8x16xbf16> to vector<8x8x16xbf16>
    %24 = vector.shape_cast %23 : vector<8x8x16xbf16> to vector<64x16xbf16>
    %c3 = arith.constant 3 : index
    %c0_25 = arith.constant 0 : index
    %c0_26 = arith.constant 0 : index
    %25 = vector.load %arg2[%c3, %c0_25, %c0_26] : memref<4x16x12xbf16, #tpu.memory_space<vmem>>, vector<1x16x12xbf16>
    %26 = vector.shape_cast %25 : vector<1x16x12xbf16> to vector<16x12xbf16>
    %cst_27 = arith.constant dense<0.000000e+00> : vector<64x12xf32>
    %27 = tpu.matmul %24, %26, %cst_27 {dimension_numbers = #tpu.dot_dimension_numbers<[1], [0], [0], [1], [0, 0, 1, 1], [], []>} : vector<64x16xbf16>, vector<16x12xbf16>, vector<64x12xf32> -> vector<64x12xf32>
    %28 = arith.addf %21, %27 : vector<64x12xf32>
    %c0_28 = arith.constant 0 : index
    %c0_29 = arith.constant 0 : index
    %29 = vector.load %arg3[%c0_28, %c0_29] : memref<1x12xf32, #tpu.memory_space<vmem>>, vector<1x12xf32>
    %30 = vector.broadcast %29 : vector<1x12xf32> to vector<64x12xf32>
    %31 = arith.addf %28, %30 : vector<64x12xf32>
    %c0_30 = arith.constant 0 : index
    %c1_31 = arith.constant 1 : index
    %c1_32 = arith.constant 1 : index
    %c0_33 = arith.constant 0 : index
    %32 = vector.load %arg1[%c0_30, %c1_31, %c1_32, %c0_33] : memref<1x9x9x16xbf16, #tpu.memory_space<vmem>>, vector<1x8x8x16xbf16>
    %33 = vector.shape_cast %32 : vector<1x8x8x16xbf16> to vector<8x8x16xbf16>
    %34 = arith.extf %33 : vector<8x8x16xbf16> to vector<8x8x16xf32>
    %35 = vector.shape_cast %34 : vector<8x8x16xf32> to vector<64x16xf32>
    %36 = vector.extract_strided_slice %35 {offsets = [0, 0], sizes = [64, 4], strides = [1, 1]} : vector<64x16xf32> to vector<64x4xf32>
    %37 = vector.extract_strided_slice %35 {offsets = [0, 4], sizes = [64, 4], strides = [1, 1]} : vector<64x16xf32> to vector<64x4xf32>
    %38 = arith.maximumf %36, %37 : vector<64x4xf32>
    %39 = vector.extract_strided_slice %35 {offsets = [0, 8], sizes = [64, 4], strides = [1, 1]} : vector<64x16xf32> to vector<64x4xf32>
    %40 = vector.extract_strided_slice %35 {offsets = [0, 12], sizes = [64, 4], strides = [1, 1]} : vector<64x16xf32> to vector<64x4xf32>
    %41 = arith.maximumf %39, %40 : vector<64x4xf32>
    %42 = arith.maximumf %38, %41 : vector<64x4xf32>
    %43 = tpu.concatenate %31, %42 in 1 : vector<64x12xf32>, vector<64x4xf32> -> vector<64x16xf32>
    %cst_34 = arith.constant 1.000000e+00 : f32
    %44 = vector.broadcast %cst_34 : f32 to vector<1x64xf32>
    %cst_35 = arith.constant dense<0.000000e+00> : vector<1x16xf32>
    %45 = tpu.matmul %44, %43, %cst_35 {dimension_numbers = #tpu.dot_dimension_numbers<[1], [0], [0], [1], [0, 0, 1, 1], [], []>} : vector<1x64xf32>, vector<64x16xf32>, vector<1x16xf32> -> vector<1x16xf32>
    %46 = arith.mulf %43, %43 : vector<64x16xf32>
    %cst_36 = arith.constant dense<0.000000e+00> : vector<1x16xf32>
    %47 = tpu.matmul %44, %46, %cst_36 {dimension_numbers = #tpu.dot_dimension_numbers<[1], [0], [0], [1], [0, 0, 1, 1], [], []>} : vector<1x64xf32>, vector<64x16xf32>, vector<1x16xf32> -> vector<1x16xf32>
    %48 = arith.truncf %43 : vector<64x16xf32> to vector<64x16xbf16>
    %c0_37 = arith.constant 0 : index
    %c0_38 = arith.constant 0 : index
    %c0_39 = arith.constant 0 : index
    %49 = vector.load %arg4[%c0_37, %c0_38, %c0_39] : memref<1x64x16xbf16, #tpu.memory_space<vmem>>, vector<1x64x16xbf16>
    %50 = vector.shape_cast %49 : vector<1x64x16xbf16> to vector<64x16xbf16>
    %51 = vector.shape_cast %48 : vector<64x16xbf16> to vector<1x64x16xbf16>
    tpu.vector_store %arg4[%c0_37, %c0_38, %c0_39], %51 {strides = array<i32>} : memref<1x64x16xbf16, #tpu.memory_space<vmem>>, vector<1x64x16xbf16>,
    %52 = tpu.concatenate %45, %47 in 0 : vector<1x16xf32>, vector<1x16xf32> -> vector<2x16xf32>
    %c0_40 = arith.constant 0 : index
    %c0_41 = arith.constant 0 : index
    %c0_42 = arith.constant 0 : index
    %53 = vector.load %arg5[%c0_40, %c0_41, %c0_42] : memref<1x2x16xf32, #tpu.memory_space<vmem>>, vector<1x2x16xf32>
    %54 = vector.shape_cast %53 : vector<1x2x16xf32> to vector<2x16xf32>
    %55 = vector.shape_cast %52 : vector<2x16xf32> to vector<1x2x16xf32>
    tpu.vector_store %arg5[%c0_40, %c0_41, %c0_42], %55 {strides = array<i32>} : memref<1x2x16xf32, #tpu.memory_space<vmem>>, vector<1x2x16xf32>,
    return
  }
  func.func @transform_0(%arg0: i32) -> (i32, i32, i32, i32) {
    %c0_i32 = arith.constant 0 : i32
    %c0_i32_0 = arith.constant 0 : i32
    %c0_i32_1 = arith.constant 0 : i32
    %c0_i32_2 = arith.constant 0 : i32
    return %arg0, %c0_i32, %c0_i32_0, %c0_i32_1 : i32, i32, i32, i32
  }
  func.func @transform_1(%arg0: i32) -> (i32, i32, i32) {
    %c0_i32 = arith.constant 0 : i32
    %c0_i32_0 = arith.constant 0 : i32
    %c0_i32_1 = arith.constant 0 : i32
    %c0_i32_2 = arith.constant 0 : i32
    return %c0_i32, %c0_i32_0, %c0_i32_1 : i32, i32, i32
  }
  func.func @transform_2(%arg0: i32) -> (i32, i32) {
    %c0_i32 = arith.constant 0 : i32
    %c0_i32_0 = arith.constant 0 : i32
    %c0_i32_1 = arith.constant 0 : i32
    return %c0_i32, %c0_i32_0 : i32, i32
  }
  func.func @transform_3(%arg0: i32) -> (i32, i32, i32) {
    %c0_i32 = arith.constant 0 : i32
    %c0_i32_0 = arith.constant 0 : i32
    %c0_i32_1 = arith.constant 0 : i32
    return %arg0, %c0_i32, %c0_i32_0 : i32, i32, i32
  }
  func.func @transform_4(%arg0: i32) -> (i32, i32, i32) {
    %c0_i32 = arith.constant 0 : i32
    %c0_i32_0 = arith.constant 0 : i32
    %c0_i32_1 = arith.constant 0 : i32
    return %arg0, %c0_i32, %c0_i32_0 : i32, i32, i32
  }
}

module attributes {stable_mosaic.version = 11 : i64} {
  func.func @_bn_relu_kernel(%arg0: i32, %arg1: memref<2x1024xbf16, #tpu.memory_space<vmem>>, %arg2: memref<2x1024xf32, #tpu.memory_space<vmem>>, %arg3: memref<1x1024xf32, #tpu.memory_space<vmem>>, %arg4: memref<1x1024xf32, #tpu.memory_space<vmem>>, %arg5: memref<2x1024xf32, #tpu.memory_space<vmem>>) attributes {dimension_semantics = [#tpu.dimension_semantics<parallel>], iteration_bounds = array<i64: 1>, scalar_prefetch = 0 : i64, scratch_operands = 0 : i64, tpu.core_type = #tpu.core_type<tc>, window_params = [{transform_indices = @transform_0, window_bounds = array<i64: 2, 1024>}, {pipeline_mode = #tpu.pipeline_mode<synchronous>, transform_indices = @transform_1, window_bounds = array<i64: 2, 1024>}, {pipeline_mode = #tpu.pipeline_mode<synchronous>, transform_indices = @transform_2, window_bounds = array<i64: 1, 1024>}, {pipeline_mode = #tpu.pipeline_mode<synchronous>, transform_indices = @transform_3, window_bounds = array<i64: 1, 1024>}, {transform_indices = @transform_4, window_bounds = array<i64: 2, 1024>}]} {
    %c0 = arith.constant 0 : index
    %c0_0 = arith.constant 0 : index
    %0 = vector.load %arg2[%c0, %c0_0] : memref<2x1024xf32, #tpu.memory_space<vmem>>, vector<1x1024xf32>
    %cst = arith.constant 7.812500e-03 : f32
    %1 = vector.broadcast %cst : f32 to vector<1x1024xf32>
    %2 = arith.mulf %0, %1 : vector<1x1024xf32>
    %c1 = arith.constant 1 : index
    %c0_1 = arith.constant 0 : index
    %3 = vector.load %arg2[%c1, %c0_1] : memref<2x1024xf32, #tpu.memory_space<vmem>>, vector<1x1024xf32>
    %cst_2 = arith.constant 7.812500e-03 : f32
    %4 = vector.broadcast %cst_2 : f32 to vector<1x1024xf32>
    %5 = arith.mulf %3, %4 : vector<1x1024xf32>
    %6 = arith.mulf %2, %2 : vector<1x1024xf32>
    %7 = arith.subf %5, %6 : vector<1x1024xf32>
    %c0_3 = arith.constant 0 : index
    %c0_4 = arith.constant 0 : index
    %8 = vector.load %arg3[%c0_3, %c0_4] : memref<1x1024xf32, #tpu.memory_space<vmem>>, vector<1x1024xf32>
    %cst_5 = arith.constant 1.000000e-03 : f32
    %9 = vector.broadcast %cst_5 : f32 to vector<1x1024xf32>
    %10 = arith.addf %7, %9 : vector<1x1024xf32>
    %11 = math.rsqrt %10 : vector<1x1024xf32>
    %12 = arith.mulf %8, %11 : vector<1x1024xf32>
    %c0_6 = arith.constant 0 : index
    %c0_7 = arith.constant 0 : index
    %13 = vector.load %arg4[%c0_6, %c0_7] : memref<1x1024xf32, #tpu.memory_space<vmem>>, vector<1x1024xf32>
    %14 = arith.mulf %2, %12 : vector<1x1024xf32>
    %15 = arith.subf %13, %14 : vector<1x1024xf32>
    %c0_8 = arith.constant 0 : index
    %c0_9 = arith.constant 0 : index
    %16 = vector.load %arg1[%c0_8, %c0_9] : memref<2x1024xbf16, #tpu.memory_space<vmem>>, vector<2x1024xbf16>
    %17 = arith.extf %16 : vector<2x1024xbf16> to vector<2x1024xf32>
    %18 = vector.broadcast %12 : vector<1x1024xf32> to vector<2x1024xf32>
    %19 = arith.mulf %17, %18 : vector<2x1024xf32>
    %20 = vector.broadcast %15 : vector<1x1024xf32> to vector<2x1024xf32>
    %21 = arith.addf %19, %20 : vector<2x1024xf32>
    %cst_10 = arith.constant 0.000000e+00 : f32
    %22 = vector.broadcast %cst_10 : f32 to vector<2x1024xf32>
    %23 = arith.maximumf %21, %22 : vector<2x1024xf32>
    %c0_11 = arith.constant 0 : index
    %c0_12 = arith.constant 0 : index
    %24 = vector.load %arg5[%c0_11, %c0_12] : memref<2x1024xf32, #tpu.memory_space<vmem>>, vector<2x1024xf32>
    tpu.vector_store %arg5[%c0_11, %c0_12], %23 {strides = array<i32>} : memref<2x1024xf32, #tpu.memory_space<vmem>>, vector<2x1024xf32>,
    return
  }
  func.func @transform_0(%arg0: i32) -> (i32, i32) {
    %c0_i32 = arith.constant 0 : i32
    %c0_i32_0 = arith.constant 0 : i32
    return %arg0, %c0_i32 : i32, i32
  }
  func.func @transform_1(%arg0: i32) -> (i32, i32) {
    %c0_i32 = arith.constant 0 : i32
    %c0_i32_0 = arith.constant 0 : i32
    %c0_i32_1 = arith.constant 0 : i32
    return %c0_i32, %c0_i32_0 : i32, i32
  }
  func.func @transform_2(%arg0: i32) -> (i32, i32) {
    %c0_i32 = arith.constant 0 : i32
    %c0_i32_0 = arith.constant 0 : i32
    %c0_i32_1 = arith.constant 0 : i32
    return %c0_i32, %c0_i32_0 : i32, i32
  }
  func.func @transform_3(%arg0: i32) -> (i32, i32) {
    %c0_i32 = arith.constant 0 : i32
    %c0_i32_0 = arith.constant 0 : i32
    %c0_i32_1 = arith.constant 0 : i32
    return %c0_i32, %c0_i32_0 : i32, i32
  }
  func.func @transform_4(%arg0: i32) -> (i32, i32) {
    %c0_i32 = arith.constant 0 : i32
    %c0_i32_0 = arith.constant 0 : i32
    return %arg0, %c0_i32 : i32, i32
  }
}

</mosaic_0001>

<llo_original>
// kernel: tile.17
$region0: #{tile.17}
  %s0 = inlined_call_operand.vmem [shape: f32[2,64,16], index: 0, kind: input, shape index: {}]
  %s1 = inlined_call_operand.vmem [shape: f32[2,1024], index: 1, kind: output, shape index: {}]
  $region1: #{tile.17} parent=0
    #allocation0 [shape = 'u8[32768]{0}', space=vmem, size = 0x8000, scoped, tag = 'scoped mem for output reshape']
    %v2 = vld [vmem:[%s0] ss:$8 sm:$0xf]
    %v3 = vld [vmem:[%s0] ss:$8 sm:$0xf0]
    %vm4 = vcmask 1047556
    %v5 = vsel %vm4, %v3, %v2
    %vm6 = vcmask 130048
    %7 = vst.msk [vmem:[#allocation0] ss:$8 sm:$0xf] %vm6, %v5
    %8 = vst.msk [vmem:[#allocation0] ss:$8 sm:$0xf0] %vm6, %v5
    %s9 = scalar_lea.vmem %s0, 64
    %v10 = vld [vmem:[%s9] ss:$8 sm:$0xf]
    %s11 = scalar_lea.vmem %s0, 64
    %v12 = vld [vmem:[%s11] ss:$8 sm:$0xf0]
    %vm13 = vcmask 1047556
    %v14 = vsel %vm13, %v12, %v10
    %vm15 = vcmask 130048
    %s16 = scalar_lea.vmem [#allocation0], 1
    %17 = vst.msk [vmem:[%s16] ss:$8 sm:$0xf] %vm15, %v14
    %s18 = scalar_lea.vmem [#allocation0], 1
    %19 = vst.msk [vmem:[%s18] ss:$8 sm:$0xf0] %vm15, %v14
    %s20 = scalar_lea.vmem %s0, 7
    %v21 = vld [vmem:[%s20] sm:$0x1]
    %s22 = scalar_lea.vmem %s0, 127
    %s23 = smov 6
    %v24 = vld [vmem:[%s22] ss:$-56 sm:%s23]
    %vm25 = vcmask 1042433
    %v26 = vsel %vm25, %v24, %v21
    %s27 = scalar_lea.vmem %s0, 247
    %s28 = smov 24
    %v29 = vld [vmem:[%s27] ss:$-56 sm:%s28]
    %vm30 = vcmask 1044483
    %v31 = vsel %vm30, %v29, %v26
    %s32 = scalar_lea.vmem %s0, 367
    %s33 = smov 96
    %v34 = vld [vmem:[%s32] ss:$-56 sm:%s33]
    %vm35 = vcmask 1046533
    %v36 = vsel %vm35, %v34, %v31
    %s37 = scalar_lea.vmem %s0, 88
    %v38 = vld [vmem:[%s37] sm:$0x80]
    %vm39 = vcmask 1047559
    %v40 = vsel %vm39, %v38, %v36
    %41 = vrot.lane.b32.xlu0 %v40, 112
    %v42 = vpop.permute.xlu0 %41
    %vm43 = vcmask 1048448
    %44 = vst.msk [vmem:[#allocation0] sm:$0x3] %vm43, %v42
    %s45 = scalar_lea.vmem [#allocation0], 6
    %46 = vst.msk [vmem:[%s45] sm:$0xc] %vm43, %v42
    %s47 = scalar_lea.vmem [#allocation0], 12
    %48 = vst.msk [vmem:[%s47] sm:$0x30] %vm43, %v42
    %s49 = scalar_lea.vmem [#allocation0], 18
    %50 = vst.msk [vmem:[%s49] sm:$0xc0] %vm43, %v42
    %s51 = scalar_lea.vmem %s0, 39
    %v52 = vld [vmem:[%s51] sm:$0x1]
    %s53 = scalar_lea.vmem %s0, 159
    %s54 = smov 6
    %v55 = vld [vmem:[%s53] ss:$-56 sm:%s54]
    %vm56 = vcmask 1042433
    %v57 = vsel %vm56, %v55, %v52
    %s58 = scalar_lea.vmem %s0, 279
    %s59 = smov 24
    %v60 = vld [vmem:[%s58] ss:$-56 sm:%s59]
    %vm61 = vcmask 1044483
    %v62 = vsel %vm61, %v60, %v57
    %s63 = scalar_lea.vmem %s0, 399
    %s64 = smov 96
    %v65 = vld [vmem:[%s63] ss:$-56 sm:%s64]
    %vm66 = vcmask 1046533
    %v67 = vsel %vm66, %v65, %v62
    %s68 = scalar_lea.vmem %s0, 120
    %v69 = vld [vmem:[%s68] sm:$0x80]
    %vm70 = vcmask 1047559
    %v71 = vsel %vm70, %v69, %v67
    %72 = vrot.lane.b32.xlu0 %v71, 112
    %v73 = vpop.permute.xlu0 %72
    %vm74 = vcmask 1048448
    %s75 = scalar_lea.vmem [#allocation0], 32
    %76 = vst.msk [vmem:[%s75] sm:$0x3] %vm74, %v73
    %s77 = scalar_lea.vmem [#allocation0], 38
    %78 = vst.msk [vmem:[%s77] sm:$0xc] %vm74, %v73
    %s79 = scalar_lea.vmem [#allocation0], 44
    %80 = vst.msk [vmem:[%s79] sm:$0x30] %vm74, %v73
    %s81 = scalar_lea.vmem [#allocation0], 50
    %82 = vst.msk [vmem:[%s81] sm:$0xc0] %vm74, %v73
    %s83 = scalar_lea.vmem %s0, 6
    %v84 = vld [vmem:[%s83] sm:$0x1]
    %s85 = scalar_lea.vmem %s0, 126
    %s86 = smov 6
    %v87 = vld [vmem:[%s85] ss:$-56 sm:%s86]
    %vm88 = vcmask 1042433
    %v89 = vsel %vm88, %v87, %v84
    %s90 = scalar_lea.vmem %s0, 246
    %s91 = smov 24
    %v92 = vld [vmem:[%s90] ss:$-56 sm:%s91]
    %vm93 = vcmask 1044483
    %v94 = vsel %vm93, %v92, %v89
    %s95 = scalar_lea.vmem %s0, 366
    %s96 = smov 96
    %v97 = vld [vmem:[%s95] ss:$-56 sm:%s96]
    %vm98 = vcmask 1046533
    %v99 = vsel %vm98, %v97, %v94
    %s100 = scalar_lea.vmem %s0, 87
    %v101 = vld [vmem:[%s100] sm:$0x80]
    %vm102 = vcmask 1047559
    %v103 = vsel %vm102, %v101, %v99
    %104 = vrot.lane.b32.xlu0 %v103, 96
    %v105 = vpop.permute.xlu0 %104
    %vm106 = vcmask 917248
    %107 = vst.msk [vmem:[#allocation0] sm:$0x3] %vm106, %v105
    %s108 = scalar_lea.vmem [#allocation0], 6
    %109 = vst.msk [vmem:[%s108] sm:$0xc] %vm106, %v105
    %s110 = scalar_lea.vmem [#allocation0], 12
    %111 = vst.msk [vmem:[%s110] sm:$0x30] %vm106, %v105
    %s112 = scalar_lea.vmem [#allocation0], 18
    %113 = vst.msk [vmem:[%s112] sm:$0xc0] %vm106, %v105
    %s114 = scalar_lea.vmem %s0, 38
    %v115 = vld [vmem:[%s114] sm:$0x1]
    %s116 = scalar_lea.vmem %s0, 158
    %s117 = smov 6
    %v118 = vld [vmem:[%s116] ss:$-56 sm:%s117]
    %vm119 = vcmask 1042433
    %v120 = vsel %vm119, %v118, %v115
    %s121 = scalar_lea.vmem %s0, 278
    %s122 = smov 24
    %v123 = vld [vmem:[%s121] ss:$-56 sm:%s122]
    %vm124 = vcmask 1044483
    %v125 = vsel %vm124, %v123, %v120
    %s126 = scalar_lea.vmem %s0, 398
    %s127 = smov 96
    %v128 = vld [vmem:[%s126] ss:$-56 sm:%s127]
    %vm129 = vcmask 1046533
    %v130 = vsel %vm129, %v128, %v125
    %s131 = scalar_lea.vmem %s0, 119
    %v132 = vld [vmem:[%s131] sm:$0x80]
    %vm133 = vcmask 1047559
    %v134 = vsel %vm133, %v132, %v130
    %135 = vrot.lane.b32.xlu0 %v134, 96
    %v136 = vpop.permute.xlu0 %135
    %vm137 = vcmask 917248
    %s138 = scalar_lea.vmem [#allocation0], 32
    %139 = vst.msk [vmem:[%s138] sm:$0x3] %vm137, %v136
    %s140 = scalar_lea.vmem [#allocation0], 38
    %141 = vst.msk [vmem:[%s140] sm:$0xc] %vm137, %v136
    %s142 = scalar_lea.vmem [#allocation0], 44
    %143 = vst.msk [vmem:[%s142] sm:$0x30] %vm137, %v136
    %s144 = scalar_lea.vmem [#allocation0], 50
    %145 = vst.msk [vmem:[%s144] sm:$0xc0] %vm137, %v136
    %s146 = scalar_lea.vmem %s0, 5
    %v147 = vld [vmem:[%s146] sm:$0x1]
    %s148 = scalar_lea.vmem %s0, 125
    %s149 = smov 6
    %v150 = vld [vmem:[%s148] ss:$-56 sm:%s149]
    %vm151 = vcmask 1042433
    %v152 = vsel %vm151, %v150, %v147
    %s153 = scalar_lea.vmem %s0, 245
    %s154 = smov 24
    %v155 = vld [vmem:[%s153] ss:$-56 sm:%s154]
    %vm156 = vcmask 1044483
    %v157 = vsel %vm156, %v155, %v152
    %s158 = scalar_lea.vmem %s0, 365
    %s159 = smov 96
    %v160 = vld [vmem:[%s158] ss:$-56 sm:%s159]
    %vm161 = vcmask 1046533
    %v162 = vsel %vm161, %v160, %v157
    %s163 = scalar_lea.vmem %s0, 86
    %v164 = vld [vmem:[%s163] sm:$0x80]
    %vm165 = vcmask 1047559
    %v166 = vsel %vm165, %v164, %v162
    %167 = vrot.lane.b32.xlu0 %v166, 80
    %v168 = vpop.permute.xlu0 %167
    %vm169 = vcmask 786048
    %170 = vst.msk [vmem:[#allocation0] sm:$0x3] %vm169, %v168
    %s171 = scalar_lea.vmem [#allocation0], 6
    %172 = vst.msk [vmem:[%s171] sm:$0xc] %vm169, %v168
    %s173 = scalar_lea.vmem [#allocation0], 12
    %174 = vst.msk [vmem:[%s173] sm:$0x30] %vm169, %v168
    %s175 = scalar_lea.vmem [#allocation0], 18
    %176 = vst.msk [vmem:[%s175] sm:$0xc0] %vm169, %v168
    %s177 = scalar_lea.vmem %s0, 37
    %v178 = vld [vmem:[%s177] sm:$0x1]
    %s179 = scalar_lea.vmem %s0, 157
    %s180 = smov 6
    %v181 = vld [vmem:[%s179] ss:$-56 sm:%s180]
    %vm182 = vcmask 1042433
    %v183 = vsel %vm182, %v181, %v178
    %s184 = scalar_lea.vmem %s0, 277
    %s185 = smov 24
    %v186 = vld [vmem:[%s184] ss:$-56 sm:%s185]
    %vm187 = vcmask 1044483
    %v188 = vsel %vm187, %v186, %v183
    %s189 = scalar_lea.vmem %s0, 397
    %s190 = smov 96
    %v191 = vld [vmem:[%s189] ss:$-56 sm:%s190]
    %vm192 = vcmask 1046533
    %v193 = vsel %vm192, %v191, %v188
    %s194 = scalar_lea.vmem %s0, 118
    %v195 = vld [vmem:[%s194] sm:$0x80]
    %vm196 = vcmask 1047559
    %v197 = vsel %vm196, %v195, %v193
    %198 = vrot.lane.b32.xlu0 %v197, 80
    %v199 = vpop.permute.xlu0 %198
    %vm200 = vcmask 786048
    %s201 = scalar_lea.vmem [#allocation0], 32
    %202 = vst.msk [vmem:[%s201] sm:$0x3] %vm200, %v199
    %s203 = scalar_lea.vmem [#allocation0], 38
    %204 = vst.msk [vmem:[%s203] sm:$0xc] %vm200, %v199
    %s205 = scalar_lea.vmem [#allocation0], 44
    %206 = vst.msk [vmem:[%s205] sm:$0x30] %vm200, %v199
    %s207 = scalar_lea.vmem [#allocation0], 50
    %208 = vst.msk [vmem:[%s207] sm:$0xc0] %vm200, %v199
    %s209 = scalar_lea.vmem %s0, 4
    %v210 = vld [vmem:[%s209] sm:$0x1]
    %s211 = scalar_lea.vmem %s0, 124
    %s212 = smov 6
    %v213 = vld [vmem:[%s211] ss:$-56 sm:%s212]
    %vm214 = vcmask 1042433
    %v215 = vsel %vm214, %v213, %v210
    %s216 = scalar_lea.vmem %s0, 244
    %s217 = smov 24
    %v218 = vld [vmem:[%s216] ss:$-56 sm:%s217]
    %vm219 = vcmask 1044483
    %v220 = vsel %vm219, %v218, %v215
    %s221 = scalar_lea.vmem %s0, 364
    %s222 = smov 96
    %v223 = vld [vmem:[%s221] ss:$-56 sm:%s222]
    %vm224 = vcmask 1046533
    %v225 = vsel %vm224, %v223, %v220
    %s226 = scalar_lea.vmem %s0, 85
    %v227 = vld [vmem:[%s226] sm:$0x80]
    %vm228 = vcmask 1047559
    %v229 = vsel %vm228, %v227, %v225
    %230 = vrot.lane.b32.xlu0 %v229, 64
    %v231 = vpop.permute.xlu0 %230
    %vm232 = vcmask 654848
    %233 = vst.msk [vmem:[#allocation0] sm:$0x3] %vm232, %v231
    %s234 = scalar_lea.vmem [#allocation0], 6
    %235 = vst.msk [vmem:[%s234] sm:$0xc] %vm232, %v231
    %s236 = scalar_lea.vmem [#allocation0], 12
    %237 = vst.msk [vmem:[%s236] sm:$0x30] %vm232, %v231
    %s238 = scalar_lea.vmem [#allocation0], 18
    %239 = vst.msk [vmem:[%s238] sm:$0xc0] %vm232, %v231
    %s240 = scalar_lea.vmem %s0, 36
    %v241 = vld [vmem:[%s240] sm:$0x1]
    %s242 = scalar_lea.vmem %s0, 156
    %s243 = smov 6
    %v244 = vld [vmem:[%s242] ss:$-56 sm:%s243]
    %vm245 = vcmask 1042433
    %v246 = vsel %vm245, %v244, %v241
    %s247 = scalar_lea.vmem %s0, 276
    %s248 = smov 24
    %v249 = vld [vmem:[%s247] ss:$-56 sm:%s248]
    %vm250 = vcmask 1044483
    %v251 = vsel %vm250, %v249, %v246
    %s252 = scalar_lea.vmem %s0, 396
    %s253 = smov 96
    %v254 = vld [vmem:[%s252] ss:$-56 sm:%s253]
    %vm255 = vcmask 1046533
    %v256 = vsel %vm255, %v254, %v251
    %s257 = scalar_lea.vmem %s0, 117
    %v258 = vld [vmem:[%s257] sm:$0x80]
    %vm259 = vcmask 1047559
    %v260 = vsel %vm259, %v258, %v256
    %261 = vrot.lane.b32.xlu0 %v260, 64
    %v262 = vpop.permute.xlu0 %261
    %vm263 = vcmask 654848
    %s264 = scalar_lea.vmem [#allocation0], 32
    %265 = vst.msk [vmem:[%s264] sm:$0x3] %vm263, %v262
    %s266 = scalar_lea.vmem [#allocation0], 38
    %267 = vst.msk [vmem:[%s266] sm:$0xc] %vm263, %v262
    %s268 = scalar_lea.vmem [#allocation0], 44
    %269 = vst.msk [vmem:[%s268] sm:$0x30] %vm263, %v262
    %s270 = scalar_lea.vmem [#allocation0], 50
    %271 = vst.msk [vmem:[%s270] sm:$0xc0] %vm263, %v262
    %s272 = scalar_lea.vmem %s0, 3
    %v273 = vld [vmem:[%s272] sm:$0x1]
    %s274 = scalar_lea.vmem %s0, 123
    %s275 = smov 6
    %v276 = vld [vmem:[%s274] ss:$-56 sm:%s275]
    %vm277 = vcmask 1042433
    %v278 = vsel %vm277, %v276, %v273
    %s279 = scalar_lea.vmem %s0, 243
    %s280 = smov 24
    %v281 = vld [vmem:[%s279] ss:$-56 sm:%s280]
    %vm282 = vcmask 1044483
    %v283 = vsel %vm282, %v281, %v278
    %s284 = scalar_lea.vmem %s0, 363
    %s285 = smov 96
    %v286 = vld [vmem:[%s284] ss:$-56 sm:%s285]
    %vm287 = vcmask 1046533
    %v288 = vsel %vm287, %v286, %v283
    %s289 = scalar_lea.vmem %s0, 84
    %v290 = vld [vmem:[%s289] sm:$0x80]
    %vm291 = vcmask 1047559
    %v292 = vsel %vm291, %v290, %v288
    %293 = vrot.lane.b32.xlu0 %v292, 48
    %v294 = vpop.permute.xlu0 %293
    %vm295 = vcmask 523648
    %296 = vst.msk [vmem:[#allocation0] sm:$0x3] %vm295, %v294
    %s297 = scalar_lea.vmem [#allocation0], 6
    %298 = vst.msk [vmem:[%s297] sm:$0xc] %vm295, %v294
    %s299 = scalar_lea.vmem [#allocation0], 12
    %300 = vst.msk [vmem:[%s299] sm:$0x30] %vm295, %v294
    %s301 = scalar_lea.vmem [#allocation0], 18
    %302 = vst.msk [vmem:[%s301] sm:$0xc0] %vm295, %v294
    %s303 = scalar_lea.vmem %s0, 35
    %v304 = vld [vmem:[%s303] sm:$0x1]
    %s305 = scalar_lea.vmem %s0, 155
    %s306 = smov 6
    %v307 = vld [vmem:[%s305] ss:$-56 sm:%s306]
    %vm308 = vcmask 1042433
    %v309 = vsel %vm308, %v307, %v304
    %s310 = scalar_lea.vmem %s0, 275
    %s311 = smov 24
    %v312 = vld [vmem:[%s310] ss:$-56 sm:%s311]
    %vm313 = vcmask 1044483
    %v314 = vsel %vm313, %v312, %v309
    %s315 = scalar_lea.vmem %s0, 395
    %s316 = smov 96
    %v317 = vld [vmem:[%s315] ss:$-56 sm:%s316]
    %vm318 = vcmask 1046533
    %v319 = vsel %vm318, %v317, %v314
    %s320 = scalar_lea.vmem %s0, 116
    %v321 = vld [vmem:[%s320] sm:$0x80]
    %vm322 = vcmask 1047559
    %v323 = vsel %vm322, %v321, %v319
    %324 = vrot.lane.b32.xlu0 %v323, 48
    %v325 = vpop.permute.xlu0 %324
    %vm326 = vcmask 523648
    %s327 = scalar_lea.vmem [#allocation0], 32
    %328 = vst.msk [vmem:[%s327] sm:$0x3] %vm326, %v325
    %s329 = scalar_lea.vmem [#allocation0], 38
    %330 = vst.msk [vmem:[%s329] sm:$0xc] %vm326, %v325
    %s331 = scalar_lea.vmem [#allocation0], 44
    %332 = vst.msk [vmem:[%s331] sm:$0x30] %vm326, %v325
    %s333 = scalar_lea.vmem [#allocation0], 50
    %334 = vst.msk [vmem:[%s333] sm:$0xc0] %vm326, %v325
    %s335 = scalar_lea.vmem %s0, 2
    %v336 = vld [vmem:[%s335] sm:$0x1]
    %s337 = scalar_lea.vmem %s0, 122
    %s338 = smov 6
    %v339 = vld [vmem:[%s337] ss:$-56 sm:%s338]
    %vm340 = vcmask 1042433
    %v341 = vsel %vm340, %v339, %v336
    %s342 = scalar_lea.vmem %s0, 242
    %s343 = smov 24
    %v344 = vld [vmem:[%s342] ss:$-56 sm:%s343]
    %vm345 = vcmask 1044483
    %v346 = vsel %vm345, %v344, %v341
    %s347 = scalar_lea.vmem %s0, 362
    %s348 = smov 96
    %v349 = vld [vmem:[%s347] ss:$-56 sm:%s348]
    %vm350 = vcmask 1046533
    %v351 = vsel %vm350, %v349, %v346
    %s352 = scalar_lea.vmem %s0, 83
    %v353 = vld [vmem:[%s352] sm:$0x80]
    %vm354 = vcmask 1047559
    %v355 = vsel %vm354, %v353, %v351
    %356 = vrot.lane.b32.xlu0 %v355, 32
    %v357 = vpop.permute.xlu0 %356
    %vm358 = vcmask 392448
    %359 = vst.msk [vmem:[#allocation0] sm:$0x3] %vm358, %v357
    %s360 = scalar_lea.vmem [#allocation0], 6
    %361 = vst.msk [vmem:[%s360] sm:$0xc] %vm358, %v357
    %s362 = scalar_lea.vmem [#allocation0], 12
    %363 = vst.msk [vmem:[%s362] sm:$0x30] %vm358, %v357
    %s364 = scalar_lea.vmem [#allocation0], 18
    %365 = vst.msk [vmem:[%s364] sm:$0xc0] %vm358, %v357
    %s366 = scalar_lea.vmem %s0, 34
    %v367 = vld [vmem:[%s366] sm:$0x1]
    %s368 = scalar_lea.vmem %s0, 154
    %s369 = smov 6
    %v370 = vld [vmem:[%s368] ss:$-56 sm:%s369]
    %vm371 = vcmask 1042433
    %v372 = vsel %vm371, %v370, %v367
    %s373 = scalar_lea.vmem %s0, 274
    %s374 = smov 24
    %v375 = vld [vmem:[%s373] ss:$-56 sm:%s374]
    %vm376 = vcmask 1044483
    %v377 = vsel %vm376, %v375, %v372
    %s378 = scalar_lea.vmem %s0, 394
    %s379 = smov 96
    %v380 = vld [vmem:[%s378] ss:$-56 sm:%s379]
    %vm381 = vcmask 1046533
    %v382 = vsel %vm381, %v380, %v377
    %s383 = scalar_lea.vmem %s0, 115
    %v384 = vld [vmem:[%s383] sm:$0x80]
    %vm385 = vcmask 1047559
    %v386 = vsel %vm385, %v384, %v382
    %387 = vrot.lane.b32.xlu0 %v386, 32
    %v388 = vpop.permute.xlu0 %387
    %vm389 = vcmask 392448
    %s390 = scalar_lea.vmem [#allocation0], 32
    %391 = vst.msk [vmem:[%s390] sm:$0x3] %vm389, %v388
    %s392 = scalar_lea.vmem [#allocation0], 38
    %393 = vst.msk [vmem:[%s392] sm:$0xc] %vm389, %v388
    %s394 = scalar_lea.vmem [#allocation0], 44
    %395 = vst.msk [vmem:[%s394] sm:$0x30] %vm389, %v388
    %s396 = scalar_lea.vmem [#allocation0], 50
    %397 = vst.msk [vmem:[%s396] sm:$0xc0] %vm389, %v388
    %s398 = scalar_lea.vmem %s0, 1
    %v399 = vld [vmem:[%s398] sm:$0x1]
    %s400 = scalar_lea.vmem %s0, 121
    %s401 = smov 6
    %v402 = vld [vmem:[%s400] ss:$-56 sm:%s401]
    %vm403 = vcmask 1042433
    %v404 = vsel %vm403, %v402, %v399
    %s405 = scalar_lea.vmem %s0, 241
    %s406 = smov 24
    %v407 = vld [vmem:[%s405] ss:$-56 sm:%s406]
    %vm408 = vcmask 1044483
    %v409 = vsel %vm408, %v407, %v404
    %s410 = scalar_lea.vmem %s0, 361
    %s411 = smov 96
    %v412 = vld [vmem:[%s410] ss:$-56 sm:%s411]
    %vm413 = vcmask 1046533
    %v414 = vsel %vm413, %v412, %v409
    %s415 = scalar_lea.vmem %s0, 82
    %v416 = vld [vmem:[%s415] sm:$0x80]
    %vm417 = vcmask 1047559
    %v418 = vsel %vm417, %v416, %v414
    %419 = vrot.lane.b32.xlu0 %v418, 16
    %v420 = vpop.permute.xlu0 %419
    %vm421 = vcmask 261248
    %422 = vst.msk [vmem:[#allocation0] sm:$0x3] %vm421, %v420
    %s423 = scalar_lea.vmem [#allocation0], 6
    %424 = vst.msk [vmem:[%s423] sm:$0xc] %vm421, %v420
    %s425 = scalar_lea.vmem [#allocation0], 12
    %426 = vst.msk [vmem:[%s425] sm:$0x30] %vm421, %v420
    %s427 = scalar_lea.vmem [#allocation0], 18
    %428 = vst.msk [vmem:[%s427] sm:$0xc0] %vm421, %v420
    %s429 = scalar_lea.vmem %s0, 33
    %v430 = vld [vmem:[%s429] sm:$0x1]
    %s431 = scalar_lea.vmem %s0, 153
    %s432 = smov 6
    %v433 = vld [vmem:[%s431] ss:$-56 sm:%s432]
    %vm434 = vcmask 1042433
    %v435 = vsel %vm434, %v433, %v430
    %s436 = scalar_lea.vmem %s0, 273
    %s437 = smov 24
    %v438 = vld [vmem:[%s436] ss:$-56 sm:%s437]
    %vm439 = vcmask 1044483
    %v440 = vsel %vm439, %v438, %v435
    %s441 = scalar_lea.vmem %s0, 393
    %s442 = smov 96
    %v443 = vld [vmem:[%s441] ss:$-56 sm:%s442]
    %vm444 = vcmask 1046533
    %v445 = vsel %vm444, %v443, %v440
    %s446 = scalar_lea.vmem %s0, 114
    %v447 = vld [vmem:[%s446] sm:$0x80]
    %vm448 = vcmask 1047559
    %v449 = vsel %vm448, %v447, %v445
    %450 = vrot.lane.b32.xlu0 %v449, 16
    %v451 = vpop.permute.xlu0 %450
    %vm452 = vcmask 261248
    %s453 = scalar_lea.vmem [#allocation0], 32
    %454 = vst.msk [vmem:[%s453] sm:$0x3] %vm452, %v451
    %s455 = scalar_lea.vmem [#allocation0], 38
    %456 = vst.msk [vmem:[%s455] sm:$0xc] %vm452, %v451
    %s457 = scalar_lea.vmem [#allocation0], 44
    %458 = vst.msk [vmem:[%s457] sm:$0x30] %vm452, %v451
    %s459 = scalar_lea.vmem [#allocation0], 50
    %460 = vst.msk [vmem:[%s459] sm:$0xc0] %vm452, %v451
    %s462 = sshll.u32 1, 2
    %s463 = ssub.s32 %s462, 1
    %v465 = vld [vmem:[#allocation0] sm:%s463]
    %s466 = sshll.u32 1, 2
    %s467 = ssub.s32 %s466, 1
    %468 = vst [vmem:[%s1] sm:%s467] %v465
    %s469 = scalar_lea.vmem [#allocation0], 8
    %v470 = vld [vmem:[%s469] sm:%s463]
    %s471 = sshll.u32 1, 2
    %s472 = ssub.s32 %s471, 1
    %s473 = scalar_lea.vmem %s1, 2
    %474 = vst [vmem:[%s473] sm:%s472] %v470
    %s475 = scalar_lea.vmem [#allocation0], 16
    %v476 = vld [vmem:[%s475] sm:%s463]
    %s477 = sshll.u32 1, 2
    %s478 = ssub.s32 %s477, 1
    %s479 = smul.addr 2, 2
    %s480 = scalar_lea.vmem %s1, %s479
    %481 = vst [vmem:[%s480] sm:%s478] %v476
    %s482 = scalar_lea.vmem [#allocation0], 24
    %v483 = vld [vmem:[%s482] sm:%s463]
    %s484 = sshll.u32 1, 2
    %s485 = ssub.s32 %s484, 1
    %s486 = smul.addr 2, 3
    %s487 = scalar_lea.vmem %s1, %s486
    %488 = vst [vmem:[%s487] sm:%s485] %v483
    %s489 = scalar_lea.vmem [#allocation0], 32
    %v490 = vld [vmem:[%s489] sm:%s463]
    %s491 = sshll.u32 1, 2
    %s492 = ssub.s32 %s491, 1
    %s493 = smul.addr 2, 4
    %s494 = scalar_lea.vmem %s1, %s493
    %495 = vst [vmem:[%s494] sm:%s492] %v490
    %s496 = scalar_lea.vmem [#allocation0], 40
    %v497 = vld [vmem:[%s496] sm:%s463]
    %s498 = sshll.u32 1, 2
    %s499 = ssub.s32 %s498, 1
    %s500 = smul.addr 2, 5
    %s501 = scalar_lea.vmem %s1, %s500
    %502 = vst [vmem:[%s501] sm:%s499] %v497
    %s503 = scalar_lea.vmem [#allocation0], 48
    %v504 = vld [vmem:[%s503] sm:%s463]
    %s505 = sshll.u32 1, 2
    %s506 = ssub.s32 %s505, 1
    %s507 = smul.addr 2, 6
    %s508 = scalar_lea.vmem %s1, %s507
    %509 = vst [vmem:[%s508] sm:%s506] %v504
    %s510 = scalar_lea.vmem [#allocation0], 56
    %v511 = vld [vmem:[%s510] sm:%s463]
    %s512 = sshll.u32 1, 2
    %s513 = ssub.s32 %s512, 1
    %s514 = smul.addr 2, 7
    %s515 = scalar_lea.vmem %s1, %s514
    %516 = vst [vmem:[%s515] sm:%s513] %v511

// kernel: downsampler_block_forward.3
$region0: #{downsampler_block_forward.3}
  #allocation0 [shape = 'u32[]', space=smem, size = 0x4, offset = 0x4, fixed_abs, tag = 'smem constant byte address 0x4 - core index']
  #allocation1 [shape = 'u32[144,128]{1,0:T(1,128)}', space=vmem, size = 0x12000, scoped, tag = 'internal scratch']
  %s0 = inlined_call_operand.vmem [shape: bf16[2,1024], index: 0, kind: input, shape index: {}]
  %s1 = inlined_call_operand.vmem [shape: f32[2,1024], index: 1, kind: input, shape index: {}]
  %s2 = inlined_call_operand.vmem [shape: f32[1,1024], index: 2, kind: input, shape index: {}]
  %s3 = inlined_call_operand.vmem [shape: f32[1,1024], index: 3, kind: input, shape index: {}]
  %s4 = inlined_call_operand.vmem [shape: f32[2,1024], index: 4, kind: output, shape index: {}]
  %s5 = sld [smem:[#allocation0]]
  $region26: #{downsampler_block_forward.3} parent=0
    _
  %s7 = ssub.s32 1, %s5
  %s8 = scalar_select 0, %s7, %s5
  // Predicated region
  $region2: #{downsampler_block_forward.3} parent=0 // pred_check
    _
  $region3: #{downsampler_block_forward.3} parent=0 // pred_check_branch
    %10 = sbr.rel (0) target = $region5
  $region4: #{downsampler_block_forward.3} parent=0 // pred_region
    _
  $region5: #{downsampler_block_forward.3} parent=0 // pred_fallthru
    _
  // Predicated region
  $region6: #{downsampler_block_forward.3} parent=0 // pred_check
    _
  $region7: #{downsampler_block_forward.3} parent=0 // pred_check_branch
    %12 = sbr.rel (0) target = $region9
  $region8: #{downsampler_block_forward.3} parent=0 // pred_region
    _
  $region9: #{downsampler_block_forward.3} parent=0 // pred_fallthru
    _
  // Predicated region
  $region10: #{downsampler_block_forward.3} parent=0 // pred_check
    _
  $region11: #{downsampler_block_forward.3} parent=0 // pred_check_branch
    %14 = sbr.rel (0) target = $region13
  $region12: #{downsampler_block_forward.3} parent=0 // pred_region
    _
  $region13: #{downsampler_block_forward.3} parent=0 // pred_fallthru
    _
  // Predicated region
  $region14: #{downsampler_block_forward.3} parent=0 // pred_check
    _
  $region15: #{downsampler_block_forward.3} parent=0 // pred_check_branch
    %16 = sbr.rel (0) target = $region17
  $region16: #{downsampler_block_forward.3} parent=0 // pred_region
    _
  $region17: #{downsampler_block_forward.3} parent=0 // pred_fallthru
    _
  %v17 = vld [vmem:[%s1] ss:$2 sm:$0xff]
  %v18 = vmul.f32 %v17, 0.0078125
  %s19 = scalar_lea.vmem %s1, 1
  %v20 = vld [vmem:[%s19] ss:$2 sm:$0xff]
  %v21 = vmul.f32 %v20, 0.0078125
  %v22 = vmul.f32 %v18, %v18
  %v23 = vsub.f32 %v21, %v22
  %v24 = vld [vmem:[%s2] sm:$0xff]
  %v25 = vadd.f32 %v23, 0.001
  %v26 = vrsqrt.pop %v25
  %v27 = vmul.f32 %v24, %v26
  %v28 = vld [vmem:[%s3] sm:$0xff]
  %v29 = vmul.f32 %v18, %v27
  %v30 = vsub.f32 %v28, %v29
  %v31 = vld [vmem:[%s0] sm:$0xff]
  %v32 = vunpack.c.l.bf16 %v31
  %v33 = vunpack.c.h.bf16 %v31
  %v35 = vlaneseq
  %v36 = vshrl.u32 %v35, 7
  %v37 = vsub.s32 0, %v36
  %v38 = vrot.slane %v27, %v37
  %v39 = vlaneseq
  %v40 = vshrl.u32 %v39, 7
  %v41 = vsub.s32 1, %v40
  %v42 = vrot.slane %v27, %v41
  %v43 = vlaneseq
  %v44 = vshrl.u32 %v43, 7
  %v45 = vsub.s32 2, %v44
  %v46 = vrot.slane %v27, %v45
  %v47 = vlaneseq
  %v48 = vshrl.u32 %v47, 7
  %v49 = vsub.s32 3, %v48
  %v50 = vrot.slane %v27, %v49
  %v51 = vlaneseq
  %v52 = vshrl.u32 %v51, 7
  %v53 = vsub.s32 4, %v52
  %v54 = vrot.slane %v27, %v53
  %v55 = vlaneseq
  %v56 = vshrl.u32 %v55, 7
  %v57 = vsub.s32 5, %v56
  %v58 = vrot.slane %v27, %v57
  %v59 = vlaneseq
  %v60 = vshrl.u32 %v59, 7
  %v61 = vsub.s32 6, %v60
  %v62 = vrot.slane %v27, %v61
  %v63 = vlaneseq
  %v64 = vshrl.u32 %v63, 7
  %v65 = vsub.s32 7, %v64
  %v66 = vrot.slane %v27, %v65
  %v67 = vcombine.low %v38, %v42
  %v68 = vcombine.low %v46, %v50
  %v70 = vunpack.c.l.s4 1983009808
  %v71 = vunpack.c.0.s8 %v70
  %v72 = vlaneseq
  %v73 = vshrl.u32 %v72, 7
  %v74 = vsub.s32 %v71, %v73
  %v75 = vrot.slane %v67, %v74
  %v77 = vunpack.c.l.s4 1983009808
  %v78 = vunpack.c.0.s8 %v77
  %v79 = vlaneseq
  %v80 = vshrl.u32 %v79, 7
  %v81 = vsub.s32 %v78, %v80
  %v82 = vrot.slane %v68, %v81
  %v83 = vcombine.low %v75, %v82
  %v84 = vcombine.low %v54, %v58
  %v85 = vcombine.low %v62, %v66
  %v87 = vunpack.c.l.s4 1983009808
  %v88 = vunpack.c.0.s8 %v87
  %v89 = vlaneseq
  %v90 = vshrl.u32 %v89, 7
  %v91 = vsub.s32 %v88, %v90
  %v92 = vrot.slane %v84, %v91
  %v94 = vunpack.c.l.s4 1983009808
  %v95 = vunpack.c.0.s8 %v94
  %v96 = vlaneseq
  %v97 = vshrl.u32 %v96, 7
  %v98 = vsub.s32 %v95, %v97
  %v99 = vrot.slane %v85, %v98
  %v100 = vcombine.low %v92, %v99
  %v103 = vmul.f32 %v32, %v83
  %v104 = vmul.f32 %v33, %v100
  %v106 = vlaneseq
  %v107 = vshrl.u32 %v106, 7
  %v108 = vsub.s32 0, %v107
  %v109 = vrot.slane %v30, %v108
  %v110 = vlaneseq
  %v111 = vshrl.u32 %v110, 7
  %v112 = vsub.s32 1, %v111
  %v113 = vrot.slane %v30, %v112
  %v114 = vlaneseq
  %v115 = vshrl.u32 %v114, 7
  %v116 = vsub.s32 2, %v115
  %v117 = vrot.slane %v30, %v116
  %v118 = vlaneseq
  %v119 = vshrl.u32 %v118, 7
  %v120 = vsub.s32 3, %v119
  %v121 = vrot.slane %v30, %v120
  %v122 = vlaneseq
  %v123 = vshrl.u32 %v122, 7
  %v124 = vsub.s32 4, %v123
  %v125 = vrot.slane %v30, %v124
  %v126 = vlaneseq
  %v127 = vshrl.u32 %v126, 7
  %v128 = vsub.s32 5, %v127
  %v129 = vrot.slane %v30, %v128
  %v130 = vlaneseq
  %v131 = vshrl.u32 %v130, 7
  %v132 = vsub.s32 6, %v131
  %v133 = vrot.slane %v30, %v132
  %v134 = vlaneseq
  %v135 = vshrl.u32 %v134, 7
  %v136 = vsub.s32 7, %v135
  %v137 = vrot.slane %v30, %v136
  %v138 = vcombine.low %v109, %v113
  %v139 = vcombine.low %v117, %v121
  %v141 = vunpack.c.l.s4 1983009808
  %v142 = vunpack.c.0.s8 %v141
  %v143 = vlaneseq
  %v144 = vshrl.u32 %v143, 7
  %v145 = vsub.s32 %v142, %v144
  %v146 = vrot.slane %v138, %v145
  %v148 = vunpack.c.l.s4 1983009808
  %v149 = vunpack.c.0.s8 %v148
  %v150 = vlaneseq
  %v151 = vshrl.u32 %v150, 7
  %v152 = vsub.s32 %v149, %v151
  %v153 = vrot.slane %v139, %v152
  %v154 = vcombine.low %v146, %v153
  %v155 = vcombine.low %v125, %v129
  %v156 = vcombine.low %v133, %v137
  %v158 = vunpack.c.l.s4 1983009808
  %v159 = vunpack.c.0.s8 %v158
  %v160 = vlaneseq
  %v161 = vshrl.u32 %v160, 7
  %v162 = vsub.s32 %v159, %v161
  %v163 = vrot.slane %v155, %v162
  %v165 = vunpack.c.l.s4 1983009808
  %v166 = vunpack.c.0.s8 %v165
  %v167 = vlaneseq
  %v168 = vshrl.u32 %v167, 7
  %v169 = vsub.s32 %v166, %v168
  %v170 = vrot.slane %v156, %v169
  %v171 = vcombine.low %v163, %v170
  %v174 = vadd.f32 %v103, %v154
  %v175 = vadd.f32 %v104, %v171
  %v176 = vmax.f32 %v174, 0.0
  %v177 = vmax.f32 %v175, 0.0
  %178 = vst [vmem:[%s4] sm:$0xff] %v176
  %179 = vst [vmem:[%s4 + $0x8] sm:$0xff] %v177
  // Predicated region
  $region18: #{downsampler_block_forward.3} parent=0 // pred_check
    _
  $region19: #{downsampler_block_forward.3} parent=0 // pred_check_branch
    %181 = sbr.rel (0) target = $region21
  $region20: #{downsampler_block_forward.3} parent=0 // pred_region
    _
  $region21: #{downsampler_block_forward.3} parent=0 // pred_fallthru
    _
  // Predicated region
  $region22: #{downsampler_block_forward.3} parent=0 // pred_check
    _
  $region23: #{downsampler_block_forward.3} parent=0 // pred_check_branch
    %183 = sbr.rel (0) target = $region25
  $region24: #{downsampler_block_forward.3} parent=0 // pred_region
    _
  $region25: #{downsampler_block_forward.3} parent=0 // pred_fallthru
    _

// kernel: downsampler_block_forward.2
$region0: #{downsampler_block_forward.2}
  #allocation0 [shape = 'u32[]', space=smem, size = 0x4, offset = 0x4, fixed_abs, tag = 'smem constant byte address 0x4 - core index']
  #allocation1 [shape = 'u32[144,128]{1,0:T(1,128)}', space=vmem, size = 0x12000, scoped, tag = 'internal scratch']
  %s0 = inlined_call_operand.vmem [shape: bf16[2,9,9,16], index: 0, kind: input, shape index: {}]
  %s1 = inlined_call_operand.vmem [shape: bf16[4,16,12], index: 1, kind: input, shape index: {}]
  %s2 = inlined_call_operand.vmem [shape: f32[1,12], index: 2, kind: input, shape index: {}]
  %s3 = inlined_call_operand.vmem [shape: bf16[2,64,16], index: 3, kind: output, shape index: {0}]
  %s4 = inlined_call_operand.vmem [shape: f32[2,2,16], index: 4, kind: output, shape index: {1}]
  %5 = xla_tuple %s3, %s4
  %s6 = sld [smem:[#allocation0]]
  $region53: #{downsampler_block_forward.2} parent=0
    _
  %s8 = ssub.s32 1, %s6
  %s9 = scalar_select 0, %s8, %s6
  loop: start=0, step=1, limit=4
  $region2: #{downsampler_block_forward.2} parent=0 // loop_pre_header
    _
  $region3: #{downsampler_block_forward.2} parent=0 // loop_header
    %s11 = sphi 0, %s15
    %p12 = scmp.ge.s32.totalorder %s11, 4
    %s21 = sphi 0, %s23
    %s24 = sphi 0, %s21
    %s25 = sphi 0, %s24
    %s41 = sphi 0, %s25
    %s45 = sphi 0, %s45
    %s47 = sphi 0, %s45
    %s48 = sphi 0, %s47
    %s62 = sphi 0, %s48
    %s66 = sphi 0, %s66
    %s68 = sphi 0, %s66
    %s69 = sphi 0, %s68
    %s83 = sphi 0, %s69
    %s89 = sphi 0, %s91
    %s92 = sphi 0, %s89
    %s93 = sphi 0, %s92
    %s109 = sphi 0, %s93
    %s115 = sphi 0, %s117
    %s118 = sphi 0, %s115
    %s119 = sphi 0, %s118
    %s135 = sphi 0, %s119
  $region4: #{downsampler_block_forward.2} parent=0 // loop_header_branch
    %14 = sbr.rel (%p12) target = $region8
  $region5: #{downsampler_block_forward.2} parent=0 // loop_body
    %s16 = ssub.s32 %s11, 1
    %s17 = ssub.s32 %s11, 2
    %s18 = sadd.s32 %s11, 1
    %s19 = ssub.s32 %s11, %s18
    %p20 = scmp.eq.s32.totalorder %s19, 0
    %s22 = sadd.s32 %s21, 1
    %s23 = scalar_select %p20, %s21, %s22
    %p26 = pneg %p20
    %p27 = scmp.eq.s32.totalorder %s11, 1
    %p28 = por %p26, %p27
    %p29 = scmp.ne.s32.totalorder %s21, %s24
    %p30 = scmp.eq.s32.totalorder %s11, 0
    %p31 = por %p29, %p30
    %p32 = scmp.ne.s32.totalorder %s21, %s24
    %p33 = scmp.eq.s32.totalorder %s16, 1
    %p34 = por %p32, %p33
    %p35 = scmp.ne.s32.totalorder %s24, %s25
    %p36 = scmp.eq.s32.totalorder %s16, 0
    %p37 = por %p35, %p36
    %p38 = scmp.ne.s32.totalorder %s24, %s25
    %p39 = scmp.eq.s32.totalorder %s17, 1
    %p40 = por %p38, %p39
    %p42 = scmp.ne.s32.totalorder %s25, %s41
    %p43 = scmp.eq.s32.totalorder %s17, 0
    %p44 = por %p42, %p43
    %s46 = sadd.s32 %s45, 1
    %p49 = scmp.eq.s32.totalorder %s11, 1
    %p50 = scmp.ne.s32.totalorder %s45, %s47
    %p51 = scmp.eq.s32.totalorder %s11, 0
    %p52 = por %p50, %p51
    %p53 = scmp.ne.s32.totalorder %s45, %s47
    %p54 = scmp.eq.s32.totalorder %s16, 1
    %p55 = por %p53, %p54
    %p56 = scmp.ne.s32.totalorder %s47, %s48
    %p57 = scmp.eq.s32.totalorder %s16, 0
    %p58 = por %p56, %p57
    %p59 = scmp.ne.s32.totalorder %s47, %s48
    %p60 = scmp.eq.s32.totalorder %s17, 1
    %p61 = por %p59, %p60
    %p63 = scmp.ne.s32.totalorder %s48, %s62
    %p64 = scmp.eq.s32.totalorder %s17, 0
    %p65 = por %p63, %p64
    %s67 = sadd.s32 %s66, 1
    %p70 = scmp.eq.s32.totalorder %s11, 1
    %p71 = scmp.ne.s32.totalorder %s66, %s68
    %p72 = scmp.eq.s32.totalorder %s11, 0
    %p73 = por %p71, %p72
    %p74 = scmp.ne.s32.totalorder %s66, %s68
    %p75 = scmp.eq.s32.totalorder %s16, 1
    %p76 = por %p74, %p75
    %p77 = scmp.ne.s32.totalorder %s68, %s69
    %p78 = scmp.eq.s32.totalorder %s16, 0
    %p79 = por %p77, %p78
    %p80 = scmp.ne.s32.totalorder %s68, %s69
    %p81 = scmp.eq.s32.totalorder %s17, 1
    %p82 = por %p80, %p81
    %p84 = scmp.ne.s32.totalorder %s69, %s83
    %p85 = scmp.eq.s32.totalorder %s17, 0
    %p86 = por %p84, %p85
    %s87 = ssub.s32 %s11, %s18
    %p88 = scmp.eq.s32.totalorder %s87, 0
    %s90 = sadd.s32 %s89, 1
    %s91 = scalar_select %p88, %s89, %s90
    %p94 = pneg %p88
    %p95 = scmp.eq.s32.totalorder %s11, 1
    %p96 = por %p94, %p95
    %p97 = scmp.ne.s32.totalorder %s89, %s92
    %p98 = scmp.eq.s32.totalorder %s11, 0
    %p99 = por %p97, %p98
    %p100 = scmp.ne.s32.totalorder %s89, %s92
    %p101 = scmp.eq.s32.totalorder %s16, 1
    %p102 = por %p100, %p101
    %p103 = scmp.ne.s32.totalorder %s92, %s93
    %p104 = scmp.eq.s32.totalorder %s16, 0
    %p105 = por %p103, %p104
    %p106 = scmp.ne.s32.totalorder %s92, %s93
    %p107 = scmp.eq.s32.totalorder %s17, 1
    %p108 = por %p106, %p107
    %p110 = scmp.ne.s32.totalorder %s93, %s109
    %p111 = scmp.eq.s32.totalorder %s17, 0
    %p112 = por %p110, %p111
    %s113 = ssub.s32 %s11, %s18
    %p114 = scmp.eq.s32.totalorder %s113, 0
    %s116 = sadd.s32 %s115, 1
    %s117 = scalar_select %p114, %s115, %s116
    %p120 = pneg %p114
    %p121 = scmp.eq.s32.totalorder %s11, 1
    %p122 = por %p120, %p121
    %p123 = scmp.ne.s32.totalorder %s115, %s118
    %p124 = scmp.eq.s32.totalorder %s11, 0
    %p125 = por %p123, %p124
    %p126 = scmp.ne.s32.totalorder %s115, %s118
    %p127 = scmp.eq.s32.totalorder %s16, 1
    %p128 = por %p126, %p127
    %p129 = scmp.ne.s32.totalorder %s118, %s119
    %p130 = scmp.eq.s32.totalorder %s16, 0
    %p131 = por %p129, %p130
    %p132 = scmp.ne.s32.totalorder %s118, %s119
    %p133 = scmp.eq.s32.totalorder %s17, 1
    %p134 = por %p132, %p133
    %p136 = scmp.ne.s32.totalorder %s119, %s135
    %p137 = scmp.eq.s32.totalorder %s17, 0
    %p138 = por %p136, %p137
    %p139 = scmp.le.s32.totalorder 1, %s11
    %p140 = scmp.lt.s32.totalorder %s11, 3
    %p141 = pnand %p139, %p140
    %p142 = pneg %p141
    // Predicated region
    $region9: #{downsampler_block_forward.2} parent=5 // pred_check
      _
    $region10: #{downsampler_block_forward.2} parent=5 // pred_check_branch
      %144 = sbr.rel (%p141) target = $region12
    $region11: #{downsampler_block_forward.2} parent=5 // pred_region
      %s145 = ssub.s32 %s11, 1
      // Predicated region
      $region13: #{downsampler_block_forward.2} parent=11 // pred_check
        %p146 = pneg %p58
      $region14: #{downsampler_block_forward.2} parent=11 // pred_check_branch
        %148 = sbr.rel (%p146) target = $region16
      $region15: #{downsampler_block_forward.2} parent=11 // pred_region
        _
      $region16: #{downsampler_block_forward.2} parent=11 // pred_fallthru
        _
      // Predicated region
      $region17: #{downsampler_block_forward.2} parent=11 // pred_check
        %p149 = pneg %p79
      $region18: #{downsampler_block_forward.2} parent=11 // pred_check_branch
        %151 = sbr.rel (%p149) target = $region20
      $region19: #{downsampler_block_forward.2} parent=11 // pred_region
        _
      $region20: #{downsampler_block_forward.2} parent=11 // pred_fallthru
        _
    $region12: #{downsampler_block_forward.2} parent=5 // pred_fallthru
      _
    %p152 = scmp.lt.s32.totalorder %s11, 2
    // Predicated region
    $region21: #{downsampler_block_forward.2} parent=5 // pred_check
      %p153 = pneg %p152
    $region22: #{downsampler_block_forward.2} parent=5 // pred_check_branch
      %155 = sbr.rel (%p153) target = $region24
    $region23: #{downsampler_block_forward.2} parent=5 // pred_region
      // Predicated region
      $region25: #{downsampler_block_forward.2} parent=23 // pred_check
        %p156 = pneg %p31
      $region26: #{downsampler_block_forward.2} parent=23 // pred_check_branch
        %158 = sbr.rel (%p156) target = $region28
      $region27: #{downsampler_block_forward.2} parent=23 // pred_region
        %p159 = scmp.lt.s32.totalorder %s11, 1
        %s160 = scalar_select %p159, %s11, 1
        %s161 = smul.addr %s160, 18
        %s162 = smul.addr %s161, 4
        %s163 = scalar_lea.vmem %s0, %s162
      $region28: #{downsampler_block_forward.2} parent=23 // pred_fallthru
        _
    $region24: #{downsampler_block_forward.2} parent=5 // pred_fallthru
      _
    %p164 = scmp.le.s32.totalorder 1, %s11
    %p165 = scmp.lt.s32.totalorder %s11, 3
    %p166 = pnand %p164, %p165
    %p167 = pneg %p166
    // Predicated region
    $region29: #{downsampler_block_forward.2} parent=5 // pred_check
      _
    $region30: #{downsampler_block_forward.2} parent=5 // pred_check_branch
      %169 = sbr.rel (%p166) target = $region32
    $region31: #{downsampler_block_forward.2} parent=5 // pred_region
      %s170 = ssub.s32 %s11, 1
      %p171 = scmp.lt.s32.totalorder %s16, 1
      %s172 = scalar_select %p171, %s16, 1
      %s173 = smul.addr %s172, 18
      %s174 = smul.addr %s173, 4
      %s175 = scalar_lea.vmem %s0, %s174
      %p176 = pneg %p37
      %p177 = pneg %p34
      %p178 = pneg %p58
      %p179 = pneg %p55
      %p180 = pneg %p79
      %p181 = pneg %p76
      %p182 = pneg %p105
      %p183 = pneg %p102
      %p184 = scmp.lt.s32.totalorder %s16, 1
      %s185 = scalar_select %p184, %s16, 1
      %s186 = smul.addr %s185, 8
      %s187 = smul.addr %s186, 4
      %s188 = scalar_lea.vmem %s3, %s187
      %p189 = pneg %p131
      %p190 = pneg %p128
      %p191 = scmp.lt.s32.totalorder %s16, 1
      %s192 = scalar_select %p191, %s16, 1
      %s193 = smul.addr %s192, 2
      %s194 = scalar_lea.vmem %s4, %s193
      %p195 = scmp.lt.s32.totalorder %s16, 1
      %s196 = scalar_select %p195, %s16, 1
      %s197 = smul.addr %s196, 18
      %s198 = smul.addr %s197, 4
      %s199 = scalar_lea.vmem %s0, %s198
      %p200 = scmp.lt.s32.totalorder %s16, 1
      %s201 = scalar_select %p200, %s16, 1
      %s202 = smul.addr %s201, 8
      %s203 = smul.addr %s202, 4
      %s204 = scalar_lea.vmem %s3, %s203
      %p205 = scmp.lt.s32.totalorder %s16, 1
      %s206 = scalar_select %p205, %s16, 1
      %s207 = smul.addr %s206, 2
      %s208 = scalar_lea.vmem %s4, %s207
      %v210 = vld [vmem:[%s199] sm:$0xf]
      %v211 = vld [vmem:[%s199 + $0x8] sm:$0xf]
      %v212 = vld [vmem:[%s199 + $0x10] sm:$0xf]
      %v213 = vld [vmem:[%s199 + $0x18] sm:$0xf]
      %v214 = vld [vmem:[%s199 + $0x20] sm:$0xf]
      %v215 = vld [vmem:[%s199 + $0x28] sm:$0xf]
      %v216 = vld [vmem:[%s199 + $0x30] sm:$0xf]
      %v217 = vld [vmem:[%s199 + $0x38] sm:$0xf]
      %v218 = vld [vmem:[%s1] sm:$0xf]
      %v219 = vld [vmem:[%s1 + $0x4] sm:$0xf]
      %v220 = vld [vmem:[%s199 + $0x4] sm:$0x1]
      %v221 = vld [vmem:[%s199 + $0xc] sm:$0x1]
      %v222 = vld [vmem:[%s199 + $0x14] sm:$0x1]
      %v223 = vld [vmem:[%s199 + $0x1c] sm:$0x1]
      %v224 = vld [vmem:[%s199 + $0x24] sm:$0x1]
      %v225 = vld [vmem:[%s199 + $0x2c] sm:$0x1]
      %v226 = vld [vmem:[%s199 + $0x34] sm:$0x1]
      %v227 = vld [vmem:[%s199 + $0x3c] sm:$0x1]
      %vm228 = vsmask.f32 3328
      %vm229 = vsmask.f32 7440
      %vm230 = vmor %vm228, %vm229
      %v232 = vshrl.u32 %v210, 16
      %v234 = vrot.slane %v232, 4
      %v235 = vshll.u32 %v210, 16
      %v237 = vrot.slane %v235, 5
      %v238 = vor.u32 %v234, %v237
      %v239 = vrot.slane %v238, 4
      %v241 = vshll.u32 %v220, 16
      %v243 = vrot.slane %v241, 5
      %v244 = vsel %vm230, %v239, %v243
      %v246 = vshrl.u32 %v211, 16
      %v248 = vrot.slane %v246, 4
      %v249 = vshll.u32 %v211, 16
      %v251 = vrot.slane %v249, 5
      %v252 = vor.u32 %v248, %v251
      %v253 = vrot.slane %v252, 4
      %v255 = vshll.u32 %v221, 16
      %v257 = vrot.slane %v255, 5
      %v258 = vsel %vm230, %v253, %v257
      %v260 = vshrl.u32 %v212, 16
      %v262 = vrot.slane %v260, 4
      %v263 = vshll.u32 %v212, 16
      %v265 = vrot.slane %v263, 5
      %v266 = vor.u32 %v262, %v265
      %v267 = vrot.slane %v266, 4
      %v269 = vshll.u32 %v222, 16
      %v271 = vrot.slane %v269, 5
      %v272 = vsel %vm230, %v267, %v271
      %v274 = vshrl.u32 %v213, 16
      %v276 = vrot.slane %v274, 4
      %v277 = vshll.u32 %v213, 16
      %v279 = vrot.slane %v277, 5
      %v280 = vor.u32 %v276, %v279
      %v281 = vrot.slane %v280, 4
      %v283 = vshll.u32 %v223, 16
      %v285 = vrot.slane %v283, 5
      %v286 = vsel %vm230, %v281, %v285
      %v288 = vshrl.u32 %v214, 16
      %v290 = vrot.slane %v288, 4
      %v291 = vshll.u32 %v214, 16
      %v293 = vrot.slane %v291, 5
      %v294 = vor.u32 %v290, %v293
      %v295 = vrot.slane %v294, 4
      %v297 = vshll.u32 %v224, 16
      %v299 = vrot.slane %v297, 5
      %v300 = vsel %vm230, %v295, %v299
      %v302 = vshrl.u32 %v215, 16
      %v304 = vrot.slane %v302, 4
      %v305 = vshll.u32 %v215, 16
      %v307 = vrot.slane %v305, 5
      %v308 = vor.u32 %v304, %v307
      %v309 = vrot.slane %v308, 4
      %v311 = vshll.u32 %v225, 16
      %v313 = vrot.slane %v311, 5
      %v314 = vsel %vm230, %v309, %v313
      %v316 = vshrl.u32 %v216, 16
      %v318 = vrot.slane %v316, 4
      %v319 = vshll.u32 %v216, 16
      %v321 = vrot.slane %v319, 5
      %v322 = vor.u32 %v318, %v321
      %v323 = vrot.slane %v322, 4
      %v325 = vshll.u32 %v226, 16
      %v327 = vrot.slane %v325, 5
      %v328 = vsel %vm230, %v323, %v327
      %v330 = vshrl.u32 %v217, 16
      %v332 = vrot.slane %v330, 4
      %v333 = vshll.u32 %v217, 16
      %v335 = vrot.slane %v333, 5
      %v336 = vor.u32 %v332, %v335
      %v337 = vrot.slane %v336, 4
      %v339 = vshll.u32 %v227, 16
      %v341 = vrot.slane %v339, 5
      %v342 = vsel %vm230, %v337, %v341
      %s343 = scalar_lea.vmem %s1, 8
      %v344 = vld [vmem:[%s343] sm:$0xf]
      %v345 = vld [vmem:[%s343 + $0x4] sm:$0xf]
      %v346 = vunpack.c.l.b16 %v244
      %v347 = vunpack.c.l.b16 %v258
      %v348 = vunpack.c.l.b16 %v272
      %v349 = vunpack.c.l.b16 %v286
      %v350 = vunpack.c.l.b16 %v300
      %v351 = vunpack.c.l.b16 %v314
      %v352 = vunpack.c.l.b16 %v328
      %v353 = vunpack.c.l.b16 %v342
      %v354 = vpack.c.b16 %v347, %v346
      %v355 = vpack.c.b16 %v349, %v348
      %v356 = vpack.c.b16 %v351, %v350
      %v357 = vpack.c.b16 %v353, %v352
      %v360 = vunpack.c.l.b16 %v344
      %v361 = vunpack.c.l.b16 %v345
      %v362 = vpack.c.b16 %v361, %v360
      %vm364 = vcmask 130048
      %v366 = vsel %vm364, %v354, 0
      %v369 = vsel %vm364, %v355, 0
      %v372 = vsel %vm364, %v356, 0
      %v375 = vsel %vm364, %v357, 0
      %377 = vmatprep.subr.bf16.mxu0 0
      %378 = vmatpush1.bf16.msra.mxu0 0
      %379 = vmatprep.subr.bf16.mxu0 0
      %380 = vmatpush1.bf16.msra.mxu0 0
      %381 = vmatprep.subr.bf16.mxu0 0
      %382 = vmatpush1.bf16.msra.mxu0 0
      %383 = vmatprep.subr.bf16.mxu0 0
      %384 = vmatpush1.bf16.msra.mxu0 0
      %385 = vmatprep.subr.bf16.mxu0 0
      %386 = vmatpush1.bf16.msra.mxu0 0
      %387 = vmatprep.subr.bf16.mxu0 0
      %388 = vmatpush1.bf16.msra.mxu0 0
      %389 = vmatprep.subr.bf16.mxu0 0
      %390 = vmatpush1.bf16.msra.mxu0 0
      %391 = vmatprep.subr.bf16.mxu0 0
      %392 = vmatpush1.bf16.msra.mxu0 %v362
      %393 = vmatprep.subr.bf16.mxu0 0
      %394 = vmatpush2.bf16.msra.mxu0 0
      %395 = vmatprep.subr.bf16.mxu0 0
      %396 = vmatpush2.bf16.msra.mxu0 0
      %397 = vmatprep.subr.bf16.mxu0 0
      %398 = vmatpush2.bf16.msra.mxu0 0
      %399 = vmatprep.subr.bf16.mxu0 0
      %400 = vmatpush2.bf16.msra.mxu0 0
      %401 = vmatprep.subr.bf16.mxu0 0
      %402 = vmatpush2.bf16.msra.mxu0 0
      %403 = vmatprep.subr.bf16.mxu0 0
      %404 = vmatpush2.bf16.msra.mxu0 0
      %405 = vmatprep.subr.bf16.mxu0 0
      %406 = vmatpush2.bf16.msra.mxu0 0
      %407 = vmatprep.subr.bf16.mxu0 0
      %408 = vmatpush2.bf16.msra.mxu0 0
      %409 = vmatprep.mubr.bf16.mxu0 0
      %410 = vmatmul.mubr.bf16.gmra.mxu0 %v366
      %v411 = vpop.f32.mrf.mxu0
      %v412 = vadd.f32 0.0, %v411
      %v413 = vpop.f32.mrf.mxu0
      %v414 = vpop.f32.mrf.mxu0
      %v415 = vadd.f32 0.0, %v414
      %v416 = vpop.f32.mrf.mxu0
      %417 = vmatprep.mubr.bf16.mxu0 0
      %418 = vmatmul.mubr.bf16.gmra.mxu0 %v369
      %v419 = vpop.f32.mrf.mxu0
      %v420 = vadd.f32 0.0, %v419
      %v421 = vpop.f32.mrf.mxu0
      %v422 = vpop.f32.mrf.mxu0
      %v423 = vadd.f32 0.0, %v422
      %v424 = vpop.f32.mrf.mxu0
      %425 = vmatprep.mubr.bf16.mxu0 0
      %426 = vmatmul.mubr.bf16.gmra.mxu0 %v372
      %v427 = vpop.f32.mrf.mxu0
      %v428 = vadd.f32 0.0, %v427
      %v429 = vpop.f32.mrf.mxu0
      %v430 = vpop.f32.mrf.mxu0
      %v431 = vadd.f32 0.0, %v430
      %v432 = vpop.f32.mrf.mxu0
      %433 = vmatprep.mubr.bf16.mxu0 0
      %434 = vmatmul.mubr.bf16.gmra.mxu0 %v375
      %v435 = vpop.f32.mrf.mxu0
      %v436 = vadd.f32 0.0, %v435
      %v437 = vpop.f32.mrf.mxu0
      %v438 = vpop.f32.mrf.mxu0
      %v439 = vadd.f32 0.0, %v438
      %v440 = vpop.f32.mrf.mxu0
      %441 = vdwg.mxu0
      %v450 = vunpack.c.l.b16 %v210
      %v451 = vunpack.c.l.b16 %v211
      %v452 = vunpack.c.l.b16 %v212
      %v453 = vunpack.c.l.b16 %v213
      %v454 = vunpack.c.l.b16 %v214
      %v455 = vunpack.c.l.b16 %v215
      %v456 = vunpack.c.l.b16 %v216
      %v457 = vunpack.c.l.b16 %v217
      %v458 = vpack.c.b16 %v451, %v450
      %v459 = vpack.c.b16 %v453, %v452
      %v460 = vpack.c.b16 %v455, %v454
      %v461 = vpack.c.b16 %v457, %v456
      %v464 = vunpack.c.l.b16 %v218
      %v465 = vunpack.c.l.b16 %v219
      %v466 = vpack.c.b16 %v465, %v464
      %v469 = vsel %vm364, %v458, 0
      %v472 = vsel %vm364, %v459, 0
      %v475 = vsel %vm364, %v460, 0
      %v478 = vsel %vm364, %v461, 0
      %480 = vmatprep.subr.bf16.mxu0 0
      %481 = vmatpush1.bf16.msra.mxu0 0
      %482 = vmatprep.subr.bf16.mxu0 0
      %483 = vmatpush1.bf16.msra.mxu0 0
      %484 = vmatprep.subr.bf16.mxu0 0
      %485 = vmatpush1.bf16.msra.mxu0 0
      %486 = vmatprep.subr.bf16.mxu0 0
      %487 = vmatpush1.bf16.msra.mxu0 0
      %488 = vmatprep.subr.bf16.mxu0 0
      %489 = vmatpush1.bf16.msra.mxu0 0
      %490 = vmatprep.subr.bf16.mxu0 0
      %491 = vmatpush1.bf16.msra.mxu0 0
      %492 = vmatprep.subr.bf16.mxu0 0
      %493 = vmatpush1.bf16.msra.mxu0 0
      %494 = vmatprep.subr.bf16.mxu0 0
      %495 = vmatpush1.bf16.msra.mxu0 %v466
      %496 = vmatprep.subr.bf16.mxu0 0
      %497 = vmatpush2.bf16.msra.mxu0 0
      %498 = vmatprep.subr.bf16.mxu0 0
      %499 = vmatpush2.bf16.msra.mxu0 0
      %500 = vmatprep.subr.bf16.mxu0 0
      %501 = vmatpush2.bf16.msra.mxu0 0
      %502 = vmatprep.subr.bf16.mxu0 0
      %503 = vmatpush2.bf16.msra.mxu0 0
      %504 = vmatprep.subr.bf16.mxu0 0
      %505 = vmatpush2.bf16.msra.mxu0 0
      %506 = vmatprep.subr.bf16.mxu0 0
      %507 = vmatpush2.bf16.msra.mxu0 0
      %508 = vmatprep.subr.bf16.mxu0 0
      %509 = vmatpush2.bf16.msra.mxu0 0
      %510 = vmatprep.subr.bf16.mxu0 0
      %511 = vmatpush2.bf16.msra.mxu0 0
      %512 = vmatprep.mubr.bf16.mxu0 0
      %513 = vmatmul.mubr.bf16.gmra.mxu0 %v469
      %v514 = vpop.f32.mrf.mxu0
      %v515 = vadd.f32 %v412, %v514
      %v516 = vpop.f32.mrf.mxu0
      %v517 = vpop.f32.mrf.mxu0
      %v518 = vadd.f32 %v415, %v517
      %v519 = vpop.f32.mrf.mxu0
      %520 = vmatprep.mubr.bf16.mxu0 0
      %521 = vmatmul.mubr.bf16.gmra.mxu0 %v472
      %v522 = vpop.f32.mrf.mxu0
      %v523 = vadd.f32 %v420, %v522
      %v524 = vpop.f32.mrf.mxu0
      %v525 = vpop.f32.mrf.mxu0
      %v526 = vadd.f32 %v423, %v525
      %v527 = vpop.f32.mrf.mxu0
      %528 = vmatprep.mubr.bf16.mxu0 0
      %529 = vmatmul.mubr.bf16.gmra.mxu0 %v475
      %v530 = vpop.f32.mrf.mxu0
      %v531 = vadd.f32 %v428, %v530
      %v532 = vpop.f32.mrf.mxu0
      %v533 = vpop.f32.mrf.mxu0
      %v534 = vadd.f32 %v431, %v533
      %v535 = vpop.f32.mrf.mxu0
      %536 = vmatprep.mubr.bf16.mxu0 0
      %537 = vmatmul.mubr.bf16.gmra.mxu0 %v478
      %v538 = vpop.f32.mrf.mxu0
      %v539 = vadd.f32 %v436, %v538
      %v540 = vpop.f32.mrf.mxu0
      %v541 = vpop.f32.mrf.mxu0
      %v542 = vadd.f32 %v439, %v541
      %v543 = vpop.f32.mrf.mxu0
      %544 = vdwg.mxu0
      %s545 = scalar_lea.vmem %s199, 8
      %v546 = vld [vmem:[%s545] sm:$0xf]
      %v547 = vld [vmem:[%s545 + $0x8] sm:$0xf]
      %v548 = vld [vmem:[%s545 + $0x10] sm:$0xf]
      %v549 = vld [vmem:[%s545 + $0x18] sm:$0xf]
      %v550 = vld [vmem:[%s545 + $0x20] sm:$0xf]
      %v551 = vld [vmem:[%s545 + $0x28] sm:$0xf]
      %v552 = vld [vmem:[%s545 + $0x30] sm:$0xf]
      %v553 = vld [vmem:[%s545 + $0x38] sm:$0xf]
      %s554 = scalar_lea.vmem %s1, 16
      %v555 = vld [vmem:[%s554] sm:$0xf]
      %v556 = vld [vmem:[%s554 + $0x4] sm:$0xf]
      %v565 = vunpack.c.l.b16 %v546
      %v566 = vunpack.c.l.b16 %v547
      %v567 = vunpack.c.l.b16 %v548
      %v568 = vunpack.c.l.b16 %v549
      %v569 = vunpack.c.l.b16 %v550
      %v570 = vunpack.c.l.b16 %v551
      %v571 = vunpack.c.l.b16 %v552
      %v572 = vunpack.c.l.b16 %v553
      %v573 = vpack.c.b16 %v566, %v565
      %v574 = vpack.c.b16 %v568, %v567
      %v575 = vpack.c.b16 %v570, %v569
      %v576 = vpack.c.b16 %v572, %v571
      %v579 = vunpack.c.l.b16 %v555
      %v580 = vunpack.c.l.b16 %v556
      %v581 = vpack.c.b16 %v580, %v579
      %v584 = vsel %vm364, %v573, 0
      %v587 = vsel %vm364, %v574, 0
      %v590 = vsel %vm364, %v575, 0
      %v593 = vsel %vm364, %v576, 0
      %595 = vmatprep.subr.bf16.mxu0 0
      %596 = vmatpush1.bf16.msra.mxu0 0
      %597 = vmatprep.subr.bf16.mxu0 0
      %598 = vmatpush1.bf16.msra.mxu0 0
      %599 = vmatprep.subr.bf16.mxu0 0
      %600 = vmatpush1.bf16.msra.mxu0 0
      %601 = vmatprep.subr.bf16.mxu0 0
      %602 = vmatpush1.bf16.msra.mxu0 0
      %603 = vmatprep.subr.bf16.mxu0 0
      %604 = vmatpush1.bf16.msra.mxu0 0
      %605 = vmatprep.subr.bf16.mxu0 0
      %606 = vmatpush1.bf16.msra.mxu0 0
      %607 = vmatprep.subr.bf16.mxu0 0
      %608 = vmatpush1.bf16.msra.mxu0 0
      %609 = vmatprep.subr.bf16.mxu0 0
      %610 = vmatpush1.bf16.msra.mxu0 %v581
      %611 = vmatprep.subr.bf16.mxu0 0
      %612 = vmatpush2.bf16.msra.mxu0 0
      %613 = vmatprep.subr.bf16.mxu0 0
      %614 = vmatpush2.bf16.msra.mxu0 0
      %615 = vmatprep.subr.bf16.mxu0 0
      %616 = vmatpush2.bf16.msra.mxu0 0
      %617 = vmatprep.subr.bf16.mxu0 0
      %618 = vmatpush2.bf16.msra.mxu0 0
      %619 = vmatprep.subr.bf16.mxu0 0
      %620 = vmatpush2.bf16.msra.mxu0 0
      %621 = vmatprep.subr.bf16.mxu0 0
      %622 = vmatpush2.bf16.msra.mxu0 0
      %623 = vmatprep.subr.bf16.mxu0 0
      %624 = vmatpush2.bf16.msra.mxu0 0
      %625 = vmatprep.subr.bf16.mxu0 0
      %626 = vmatpush2.bf16.msra.mxu0 0
      %627 = vmatprep.mubr.bf16.mxu0 0
      %628 = vmatmul.mubr.bf16.gmra.mxu0 %v584
      %v629 = vpop.f32.mrf.mxu0
      %v630 = vadd.f32 0.0, %v629
      %v631 = vpop.f32.mrf.mxu0
      %v632 = vpop.f32.mrf.mxu0
      %v633 = vadd.f32 0.0, %v632
      %v634 = vpop.f32.mrf.mxu0
      %635 = vmatprep.mubr.bf16.mxu0 0
      %636 = vmatmul.mubr.bf16.gmra.mxu0 %v587
      %v637 = vpop.f32.mrf.mxu0
      %v638 = vadd.f32 0.0, %v637
      %v639 = vpop.f32.mrf.mxu0
      %v640 = vpop.f32.mrf.mxu0
      %v641 = vadd.f32 0.0, %v640
      %v642 = vpop.f32.mrf.mxu0
      %643 = vmatprep.mubr.bf16.mxu0 0
      %644 = vmatmul.mubr.bf16.gmra.mxu0 %v590
      %v645 = vpop.f32.mrf.mxu0
      %v646 = vadd.f32 0.0, %v645
      %v647 = vpop.f32.mrf.mxu0
      %v648 = vpop.f32.mrf.mxu0
      %v649 = vadd.f32 0.0, %v648
      %v650 = vpop.f32.mrf.mxu0
      %651 = vmatprep.mubr.bf16.mxu0 0
      %652 = vmatmul.mubr.bf16.gmra.mxu0 %v593
      %v653 = vpop.f32.mrf.mxu0
      %v654 = vadd.f32 0.0, %v653
      %v655 = vpop.f32.mrf.mxu0
      %v656 = vpop.f32.mrf.mxu0
      %v657 = vadd.f32 0.0, %v656
      %v658 = vpop.f32.mrf.mxu0
      %659 = vdwg.mxu0
      %v660 = vadd.f32 %v515, %v630
      %v661 = vadd.f32 %v518, %v633
      %v662 = vadd.f32 %v523, %v638
      %v663 = vadd.f32 %v526, %v641
      %v664 = vadd.f32 %v531, %v646
      %v665 = vadd.f32 %v534, %v649
      %v666 = vadd.f32 %v539, %v654
      %v667 = vadd.f32 %v542, %v657
      %v668 = vld [vmem:[%s545] sm:$0xf]
      %v669 = vld [vmem:[%s545 + $0x4] sm:$0x1]
      %v670 = vld [vmem:[%s545 + $0x8] sm:$0xf]
      %v671 = vld [vmem:[%s545 + $0xc] sm:$0x1]
      %v672 = vld [vmem:[%s545 + $0x10] sm:$0xf]
      %v673 = vld [vmem:[%s545 + $0x14] sm:$0x1]
      %v674 = vld [vmem:[%s545 + $0x18] sm:$0xf]
      %v675 = vld [vmem:[%s545 + $0x1c] sm:$0x1]
      %v676 = vld [vmem:[%s545 + $0x20] sm:$0xf]
      %v677 = vld [vmem:[%s545 + $0x24] sm:$0x1]
      %v678 = vld [vmem:[%s545 + $0x28] sm:$0xf]
      %v679 = vld [vmem:[%s545 + $0x2c] sm:$0x1]
      %v680 = vld [vmem:[%s545 + $0x30] sm:$0xf]
      %v681 = vld [vmem:[%s545 + $0x34] sm:$0x1]
      %v682 = vld [vmem:[%s545 + $0x38] sm:$0xf]
      %v683 = vld [vmem:[%s545 + $0x3c] sm:$0x1]
      %v685 = vshrl.u32 %v668, 16
      %v687 = vrot.slane %v685, 4
      %v688 = vshll.u32 %v668, 16
      %v690 = vrot.slane %v688, 5
      %v691 = vor.u32 %v687, %v690
      %v692 = vrot.slane %v691, 4
      %v694 = vshll.u32 %v669, 16
      %v696 = vrot.slane %v694, 5
      %v697 = vsel %vm230, %v692, %v696
      %v699 = vshrl.u32 %v670, 16
      %v701 = vrot.slane %v699, 4
      %v702 = vshll.u32 %v670, 16
      %v704 = vrot.slane %v702, 5
      %v705 = vor.u32 %v701, %v704
      %v706 = vrot.slane %v705, 4
      %v708 = vshll.u32 %v671, 16
      %v710 = vrot.slane %v708, 5
      %v711 = vsel %vm230, %v706, %v710
      %v713 = vshrl.u32 %v672, 16
      %v715 = vrot.slane %v713, 4
      %v716 = vshll.u32 %v672, 16
      %v718 = vrot.slane %v716, 5
      %v719 = vor.u32 %v715, %v718
      %v720 = vrot.slane %v719, 4
      %v722 = vshll.u32 %v673, 16
      %v724 = vrot.slane %v722, 5
      %v725 = vsel %vm230, %v720, %v724
      %v727 = vshrl.u32 %v674, 16
      %v729 = vrot.slane %v727, 4
      %v730 = vshll.u32 %v674, 16
      %v732 = vrot.slane %v730, 5
      %v733 = vor.u32 %v729, %v732
      %v734 = vrot.slane %v733, 4
      %v736 = vshll.u32 %v675, 16
      %v738 = vrot.slane %v736, 5
      %v739 = vsel %vm230, %v734, %v738
      %v741 = vshrl.u32 %v676, 16
      %v743 = vrot.slane %v741, 4
      %v744 = vshll.u32 %v676, 16
      %v746 = vrot.slane %v744, 5
      %v747 = vor.u32 %v743, %v746
      %v748 = vrot.slane %v747, 4
      %v750 = vshll.u32 %v677, 16
      %v752 = vrot.slane %v750, 5
      %v753 = vsel %vm230, %v748, %v752
      %v755 = vshrl.u32 %v678, 16
      %v757 = vrot.slane %v755, 4
      %v758 = vshll.u32 %v678, 16
      %v760 = vrot.slane %v758, 5
      %v761 = vor.u32 %v757, %v760
      %v762 = vrot.slane %v761, 4
      %v764 = vshll.u32 %v679, 16
      %v766 = vrot.slane %v764, 5
      %v767 = vsel %vm230, %v762, %v766
      %v769 = vshrl.u32 %v680, 16
      %v771 = vrot.slane %v769, 4
      %v772 = vshll.u32 %v680, 16
      %v774 = vrot.slane %v772, 5
      %v775 = vor.u32 %v771, %v774
      %v776 = vrot.slane %v775, 4
      %v778 = vshll.u32 %v681, 16
      %v780 = vrot.slane %v778, 5
      %v781 = vsel %vm230, %v776, %v780
      %v783 = vshrl.u32 %v682, 16
      %v785 = vrot.slane %v783, 4
      %v786 = vshll.u32 %v682, 16
      %v788 = vrot.slane %v786, 5
      %v789 = vor.u32 %v785, %v788
      %v790 = vrot.slane %v789, 4
      %v792 = vshll.u32 %v683, 16
      %v794 = vrot.slane %v792, 5
      %v795 = vsel %vm230, %v790, %v794
      %s796 = scalar_lea.vmem %s1, 24
      %v797 = vld [vmem:[%s796] sm:$0xf]
      %v798 = vld [vmem:[%s796 + $0x4] sm:$0xf]
      %v799 = vunpack.c.l.b16 %v697
      %v800 = vunpack.c.l.b16 %v711
      %v801 = vunpack.c.l.b16 %v725
      %v802 = vunpack.c.l.b16 %v739
      %v803 = vunpack.c.l.b16 %v753
      %v804 = vunpack.c.l.b16 %v767
      %v805 = vunpack.c.l.b16 %v781
      %v806 = vunpack.c.l.b16 %v795
      %v807 = vpack.c.b16 %v800, %v799
      %v808 = vpack.c.b16 %v802, %v801
      %v809 = vpack.c.b16 %v804, %v803
      %v810 = vpack.c.b16 %v806, %v805
      %v813 = vunpack.c.l.b16 %v797
      %v814 = vunpack.c.l.b16 %v798
      %v815 = vpack.c.b16 %v814, %v813
      %v818 = vsel %vm364, %v807, 0
      %v821 = vsel %vm364, %v808, 0
      %v824 = vsel %vm364, %v809, 0
      %v827 = vsel %vm364, %v810, 0
      %829 = vmatprep.subr.bf16.mxu0 0
      %830 = vmatpush1.bf16.msra.mxu0 0
      %831 = vmatprep.subr.bf16.mxu0 0
      %832 = vmatpush1.bf16.msra.mxu0 0
      %833 = vmatprep.subr.bf16.mxu0 0
      %834 = vmatpush1.bf16.msra.mxu0 0
      %835 = vmatprep.subr.bf16.mxu0 0
      %836 = vmatpush1.bf16.msra.mxu0 0
      %837 = vmatprep.subr.bf16.mxu0 0
      %838 = vmatpush1.bf16.msra.mxu0 0
      %839 = vmatprep.subr.bf16.mxu0 0
      %840 = vmatpush1.bf16.msra.mxu0 0
      %841 = vmatprep.subr.bf16.mxu0 0
      %842 = vmatpush1.bf16.msra.mxu0 0
      %843 = vmatprep.subr.bf16.mxu0 0
      %844 = vmatpush1.bf16.msra.mxu0 %v815
      %845 = vmatprep.subr.bf16.mxu0 0
      %846 = vmatpush2.bf16.msra.mxu0 0
      %847 = vmatprep.subr.bf16.mxu0 0
      %848 = vmatpush2.bf16.msra.mxu0 0
      %849 = vmatprep.subr.bf16.mxu0 0
      %850 = vmatpush2.bf16.msra.mxu0 0
      %851 = vmatprep.subr.bf16.mxu0 0
      %852 = vmatpush2.bf16.msra.mxu0 0
      %853 = vmatprep.subr.bf16.mxu0 0
      %854 = vmatpush2.bf16.msra.mxu0 0
      %855 = vmatprep.subr.bf16.mxu0 0
      %856 = vmatpush2.bf16.msra.mxu0 0
      %857 = vmatprep.subr.bf16.mxu0 0
      %858 = vmatpush2.bf16.msra.mxu0 0
      %859 = vmatprep.subr.bf16.mxu0 0
      %860 = vmatpush2.bf16.msra.mxu0 0
      %861 = vmatprep.mubr.bf16.mxu0 0
      %862 = vmatmul.mubr.bf16.gmra.mxu0 %v818
      %v863 = vpop.f32.mrf.mxu0
      %v864 = vadd.f32 0.0, %v863
      %v865 = vpop.f32.mrf.mxu0
      %v866 = vpop.f32.mrf.mxu0
      %v867 = vadd.f32 0.0, %v866
      %v868 = vpop.f32.mrf.mxu0
      %869 = vmatprep.mubr.bf16.mxu0 0
      %870 = vmatmul.mubr.bf16.gmra.mxu0 %v821
      %v871 = vpop.f32.mrf.mxu0
      %v872 = vadd.f32 0.0, %v871
      %v873 = vpop.f32.mrf.mxu0
      %v874 = vpop.f32.mrf.mxu0
      %v875 = vadd.f32 0.0, %v874
      %v876 = vpop.f32.mrf.mxu0
      %877 = vmatprep.mubr.bf16.mxu0 0
      %878 = vmatmul.mubr.bf16.gmra.mxu0 %v824
      %v879 = vpop.f32.mrf.mxu0
      %v880 = vadd.f32 0.0, %v879
      %v881 = vpop.f32.mrf.mxu0
      %v882 = vpop.f32.mrf.mxu0
      %v883 = vadd.f32 0.0, %v882
      %v884 = vpop.f32.mrf.mxu0
      %885 = vmatprep.mubr.bf16.mxu0 0
      %886 = vmatmul.mubr.bf16.gmra.mxu0 %v827
      %v887 = vpop.f32.mrf.mxu0
      %v888 = vadd.f32 0.0, %v887
      %v889 = vpop.f32.mrf.mxu0
      %v890 = vpop.f32.mrf.mxu0
      %v891 = vadd.f32 0.0, %v890
      %v892 = vpop.f32.mrf.mxu0
      %893 = vdwg.mxu0
      %v894 = vadd.f32 %v660, %v864
      %v895 = vadd.f32 %v661, %v867
      %v896 = vadd.f32 %v662, %v872
      %v897 = vadd.f32 %v663, %v875
      %v898 = vadd.f32 %v664, %v880
      %v899 = vadd.f32 %v665, %v883
      %v900 = vadd.f32 %v666, %v888
      %v901 = vadd.f32 %v667, %v891
      %v902 = vld [vmem:[%s2] sm:$0x1]
      %v904 = vlaneseq
      %v905 = vshrl.u32 %v904, 7
      %v906 = vsub.s32 0, %v905
      %v907 = vrot.slane %v902, %v906
      %v909 = vadd.f32 %v894, %v907
      %v910 = vadd.f32 %v895, %v907
      %v911 = vadd.f32 %v896, %v907
      %v912 = vadd.f32 %v897, %v907
      %v913 = vadd.f32 %v898, %v907
      %v914 = vadd.f32 %v899, %v907
      %v915 = vadd.f32 %v900, %v907
      %v916 = vadd.f32 %v901, %v907
      %v917 = vunpack.c.l.bf16 %v668
      %v918 = vunpack.c.l.bf16 %v669
      %v919 = vunpack.c.l.bf16 %v670
      %v920 = vunpack.c.l.bf16 %v671
      %v921 = vunpack.c.l.bf16 %v672
      %v922 = vunpack.c.l.bf16 %v673
      %v923 = vunpack.c.l.bf16 %v674
      %v924 = vunpack.c.l.bf16 %v675
      %v925 = vunpack.c.l.bf16 %v676
      %v926 = vunpack.c.l.bf16 %v677
      %v927 = vunpack.c.l.bf16 %v678
      %v928 = vunpack.c.l.bf16 %v679
      %v929 = vunpack.c.l.bf16 %v680
      %v930 = vunpack.c.l.bf16 %v681
      %v931 = vunpack.c.l.bf16 %v682
      %v932 = vunpack.c.l.bf16 %v683
      %vm949 = vcmask 1046528
      %v950 = vrot.slane %v917, 1
      %v951 = vrot.slane %v918, 1
      %v952 = vsel %vm949, %v950, %v951
      %v953 = vrot.slane %v919, 1
      %v954 = vrot.slane %v920, 1
      %v955 = vsel %vm949, %v953, %v954
      %v956 = vrot.slane %v921, 1
      %v957 = vrot.slane %v922, 1
      %v958 = vsel %vm949, %v956, %v957
      %v959 = vrot.slane %v923, 1
      %v960 = vrot.slane %v924, 1
      %v961 = vsel %vm949, %v959, %v960
      %v962 = vrot.slane %v925, 1
      %v963 = vrot.slane %v926, 1
      %v964 = vsel %vm949, %v962, %v963
      %v965 = vrot.slane %v927, 1
      %v966 = vrot.slane %v928, 1
      %v967 = vsel %vm949, %v965, %v966
      %v968 = vrot.slane %v929, 1
      %v969 = vrot.slane %v930, 1
      %v970 = vsel %vm949, %v968, %v969
      %v971 = vrot.slane %v931, 1
      %v972 = vrot.slane %v932, 1
      %v973 = vsel %vm949, %v971, %v972
      %982 = vrot.lane.b32.xlu0 %v952, 124
      %v983 = vpop.permute.xlu0 %982
      %984 = vrot.lane.b32.xlu0 %v955, 124
      %v985 = vpop.permute.xlu0 %984
      %986 = vrot.lane.b32.xlu0 %v958, 124
      %v987 = vpop.permute.xlu0 %986
      %988 = vrot.lane.b32.xlu0 %v961, 124
      %v989 = vpop.permute.xlu0 %988
      %990 = vrot.lane.b32.xlu0 %v964, 124
      %v991 = vpop.permute.xlu0 %990
      %992 = vrot.lane.b32.xlu0 %v967, 124
      %v993 = vpop.permute.xlu0 %992
      %994 = vrot.lane.b32.xlu0 %v970, 124
      %v995 = vpop.permute.xlu0 %994
      %996 = vrot.lane.b32.xlu0 %v973, 124
      %v997 = vpop.permute.xlu0 %996
      %v1006 = vmax.f32 %v952, %v983
      %v1007 = vmax.f32 %v955, %v985
      %v1008 = vmax.f32 %v958, %v987
      %v1009 = vmax.f32 %v961, %v989
      %v1010 = vmax.f32 %v964, %v991
      %v1011 = vmax.f32 %v967, %v993
      %v1012 = vmax.f32 %v970, %v995
      %v1013 = vmax.f32 %v973, %v997
      %1022 = vrot.lane.b32.xlu0 %v1006, 120
      %v1023 = vpop.permute.xlu0 %1022
      %1024 = vrot.lane.b32.xlu0 %v1007, 120
      %v1025 = vpop.permute.xlu0 %1024
      %1026 = vrot.lane.b32.xlu0 %v1008, 120
      %v1027 = vpop.permute.xlu0 %1026
      %1028 = vrot.lane.b32.xlu0 %v1009, 120
      %v1029 = vpop.permute.xlu0 %1028
      %1030 = vrot.lane.b32.xlu0 %v1010, 120
      %v1031 = vpop.permute.xlu0 %1030
      %1032 = vrot.lane.b32.xlu0 %v1011, 120
      %v1033 = vpop.permute.xlu0 %1032
      %1034 = vrot.lane.b32.xlu0 %v1012, 120
      %v1035 = vpop.permute.xlu0 %1034
      %1036 = vrot.lane.b32.xlu0 %v1013, 120
      %v1037 = vpop.permute.xlu0 %1036
      %v1046 = vmax.f32 %v1006, %v1023
      %v1047 = vmax.f32 %v1007, %v1025
      %v1048 = vmax.f32 %v1008, %v1027
      %v1049 = vmax.f32 %v1009, %v1029
      %v1050 = vmax.f32 %v1010, %v1031
      %v1051 = vmax.f32 %v1011, %v1033
      %v1052 = vmax.f32 %v1012, %v1035
      %v1053 = vmax.f32 %v1013, %v1037
      %1062 = vrot.lane.b32.xlu0 %v1046, 12
      %v1063 = vpop.permute.xlu0 %1062
      %1064 = vrot.lane.b32.xlu0 %v1047, 12
      %v1065 = vpop.permute.xlu0 %1064
      %1066 = vrot.lane.b32.xlu0 %v1048, 12
      %v1067 = vpop.permute.xlu0 %1066
      %1068 = vrot.lane.b32.xlu0 %v1049, 12
      %v1069 = vpop.permute.xlu0 %1068
      %1070 = vrot.lane.b32.xlu0 %v1050, 12
      %v1071 = vpop.permute.xlu0 %1070
      %1072 = vrot.lane.b32.xlu0 %v1051, 12
      %v1073 = vpop.permute.xlu0 %1072
      %1074 = vrot.lane.b32.xlu0 %v1052, 12
      %v1075 = vpop.permute.xlu0 %1074
      %1076 = vrot.lane.b32.xlu0 %v1053, 12
      %v1077 = vpop.permute.xlu0 %1076
      %vm1086 = vcmask 97280
      %v1087 = vsel %vm1086, %v909, %v1063
      %v1088 = vsel %vm1086, %v910, %v1065
      %v1089 = vsel %vm1086, %v911, %v1067
      %v1090 = vsel %vm1086, %v912, %v1069
      %v1091 = vsel %vm1086, %v913, %v1071
      %v1092 = vsel %vm1086, %v914, %v1073
      %v1093 = vsel %vm1086, %v915, %v1075
      %v1094 = vsel %vm1086, %v916, %v1077
      %vm1095 = vcmask 523264
      %v1097 = vsel %vm1095, 1.0, 0
      %1099 = vmatprep.subr.mxu0 0.0
      %1100 = vmatpush1.msra.mxu0 0.0
      %1101 = vmatprep.subr.mxu0 0.0
      %1102 = vmatpush1.msra.mxu0 0.0
      %1103 = vmatprep.subr.mxu0 0.0
      %1104 = vmatpush1.msra.mxu0 0.0
      %1105 = vmatprep.subr.mxu0 0.0
      %1106 = vmatpush1.msra.mxu0 0.0
      %1107 = vmatprep.subr.mxu0 0.0
      %1108 = vmatpush1.msra.mxu0 0.0
      %1109 = vmatprep.subr.mxu0 0.0
      %1110 = vmatpush1.msra.mxu0 0.0
      %1111 = vmatprep.subr.mxu0 0.0
      %1112 = vmatpush1.msra.mxu0 0.0
      %1113 = vmatprep.subr.mxu0 0.0
      %1114 = vmatpush1.msra.mxu0 0.0
      %1115 = vmatprep.subr.mxu0 0.0
      %1116 = vmatpush1.msra.mxu0 %v1094
      %1117 = vmatprep.subr.mxu0 0.0
      %1118 = vmatpush1.msra.mxu0 %v1093
      %1119 = vmatprep.subr.mxu0 0.0
      %1120 = vmatpush1.msra.mxu0 %v1092
      %1121 = vmatprep.subr.mxu0 0.0
      %1122 = vmatpush1.msra.mxu0 %v1091
      %1123 = vmatprep.subr.mxu0 0.0
      %1124 = vmatpush1.msra.mxu0 %v1090
      %1125 = vmatprep.subr.mxu0 0.0
      %1126 = vmatpush1.msra.mxu0 %v1089
      %1127 = vmatprep.subr.mxu0 0.0
      %1128 = vmatpush1.msra.mxu0 %v1088
      %1129 = vmatprep.subr.mxu0 0.0
      %1130 = vmatpush1.msra.mxu0 %v1087
      %1131 = vmatprep.subr.mxu0 0.0
      %1132 = vmatpush2.msra.mxu0 0.0
      %1133 = vmatprep.subr.mxu0 0.0
      %1134 = vmatpush2.msra.mxu0 0.0
      %1135 = vmatprep.subr.mxu0 0.0
      %1136 = vmatpush2.msra.mxu0 0.0
      %1137 = vmatprep.subr.mxu0 0.0
      %1138 = vmatpush2.msra.mxu0 0.0
      %1139 = vmatprep.subr.mxu0 0.0
      %1140 = vmatpush2.msra.mxu0 0.0
      %1141 = vmatprep.subr.mxu0 0.0
      %1142 = vmatpush2.msra.mxu0 0.0
      %1143 = vmatprep.subr.mxu0 0.0
      %1144 = vmatpush2.msra.mxu0 0.0
      %1145 = vmatprep.subr.mxu0 0.0
      %1146 = vmatpush2.msra.mxu0 0.0
      %1147 = vmatprep.subr.mxu0 0.0
      %1148 = vmatpush2.msra.mxu0 0.0
      %1149 = vmatprep.subr.mxu0 0.0
      %1150 = vmatpush2.msra.mxu0 0.0
      %1151 = vmatprep.subr.mxu0 0.0
      %1152 = vmatpush2.msra.mxu0 0.0
      %1153 = vmatprep.subr.mxu0 0.0
      %1154 = vmatpush2.msra.mxu0 0.0
      %1155 = vmatprep.subr.mxu0 0.0
      %1156 = vmatpush2.msra.mxu0 0.0
      %1157 = vmatprep.subr.mxu0 0.0
      %1158 = vmatpush2.msra.mxu0 0.0
      %1159 = vmatprep.subr.mxu0 0.0
      %1160 = vmatpush2.msra.mxu0 0.0
      %1161 = vmatprep.subr.mxu0 0.0
      %1162 = vmatpush2.msra.mxu0 0.0
      %1163 = vmatprep.mubr.f32.mxu0 0.0
      %1164 = vmatmul.mubr.f32.gmra.mxu0 %v1097
      %v1165 = vpop.f32.mrf.mxu0
      %v1166 = vadd.f32 0.0, %v1165
      %v1167 = vpop.f32.mrf.mxu0
      %1168 = vdwg.mxu0
      %v1169 = vmul.f32 %v1087, %v1087
      %v1170 = vmul.f32 %v1088, %v1088
      %v1171 = vmul.f32 %v1089, %v1089
      %v1172 = vmul.f32 %v1090, %v1090
      %v1173 = vmul.f32 %v1091, %v1091
      %v1174 = vmul.f32 %v1092, %v1092
      %v1175 = vmul.f32 %v1093, %v1093
      %v1176 = vmul.f32 %v1094, %v1094
      %1177 = vmatprep.subr.mxu0 0.0
      %1178 = vmatpush1.msra.mxu0 0.0
      %1179 = vmatprep.subr.mxu0 0.0
      %1180 = vmatpush1.msra.mxu0 0.0
      %1181 = vmatprep.subr.mxu0 0.0
      %1182 = vmatpush1.msra.mxu0 0.0
      %1183 = vmatprep.subr.mxu0 0.0
      %1184 = vmatpush1.msra.mxu0 0.0
      %1185 = vmatprep.subr.mxu0 0.0
      %1186 = vmatpush1.msra.mxu0 0.0
      %1187 = vmatprep.subr.mxu0 0.0
      %1188 = vmatpush1.msra.mxu0 0.0
      %1189 = vmatprep.subr.mxu0 0.0
      %1190 = vmatpush1.msra.mxu0 0.0
      %1191 = vmatprep.subr.mxu0 0.0
      %1192 = vmatpush1.msra.mxu0 0.0
      %1193 = vmatprep.subr.mxu0 0.0
      %1194 = vmatpush1.msra.mxu0 %v1176
      %1195 = vmatprep.subr.mxu0 0.0
      %1196 = vmatpush1.msra.mxu0 %v1175
      %1197 = vmatprep.subr.mxu0 0.0
      %1198 = vmatpush1.msra.mxu0 %v1174
      %1199 = vmatprep.subr.mxu0 0.0
      %1200 = vmatpush1.msra.mxu0 %v1173
      %1201 = vmatprep.subr.mxu0 0.0
      %1202 = vmatpush1.msra.mxu0 %v1172
      %1203 = vmatprep.subr.mxu0 0.0
      %1204 = vmatpush1.msra.mxu0 %v1171
      %1205 = vmatprep.subr.mxu0 0.0
      %1206 = vmatpush1.msra.mxu0 %v1170
      %1207 = vmatprep.subr.mxu0 0.0
      %1208 = vmatpush1.msra.mxu0 %v1169
      %1209 = vmatprep.subr.mxu0 0.0
      %1210 = vmatpush2.msra.mxu0 0.0
      %1211 = vmatprep.subr.mxu0 0.0
      %1212 = vmatpush2.msra.mxu0 0.0
      %1213 = vmatprep.subr.mxu0 0.0
      %1214 = vmatpush2.msra.mxu0 0.0
      %1215 = vmatprep.subr.mxu0 0.0
      %1216 = vmatpush2.msra.mxu0 0.0
      %1217 = vmatprep.subr.mxu0 0.0
      %1218 = vmatpush2.msra.mxu0 0.0
      %1219 = vmatprep.subr.mxu0 0.0
      %1220 = vmatpush2.msra.mxu0 0.0
      %1221 = vmatprep.subr.mxu0 0.0
      %1222 = vmatpush2.msra.mxu0 0.0
      %1223 = vmatprep.subr.mxu0 0.0
      %1224 = vmatpush2.msra.mxu0 0.0
      %1225 = vmatprep.subr.mxu0 0.0
      %1226 = vmatpush2.msra.mxu0 0.0
      %1227 = vmatprep.subr.mxu0 0.0
      %1228 = vmatpush2.msra.mxu0 0.0
      %1229 = vmatprep.subr.mxu0 0.0
      %1230 = vmatpush2.msra.mxu0 0.0
      %1231 = vmatprep.subr.mxu0 0.0
      %1232 = vmatpush2.msra.mxu0 0.0
      %1233 = vmatprep.subr.mxu0 0.0
      %1234 = vmatpush2.msra.mxu0 0.0
      %1235 = vmatprep.subr.mxu0 0.0
      %1236 = vmatpush2.msra.mxu0 0.0
      %1237 = vmatprep.subr.mxu0 0.0
      %1238 = vmatpush2.msra.mxu0 0.0
      %1239 = vmatprep.subr.mxu0 0.0
      %1240 = vmatpush2.msra.mxu0 0.0
      %1241 = vmatprep.mubr.f32.mxu0 0.0
      %1242 = vmatmul.mubr.f32.gmra.mxu0 %v1097
      %v1243 = vpop.f32.mrf.mxu0
      %v1244 = vadd.f32 0.0, %v1243
      %v1245 = vpop.f32.mrf.mxu0
      %1246 = vdwg.mxu0
      %v1247 = vpack.c.bf16 %v1088, %v1087
      %v1248 = vpack.c.bf16 %v1090, %v1089
      %v1249 = vpack.c.bf16 %v1092, %v1091
      %v1250 = vpack.c.bf16 %v1094, %v1093
      %v1255 = vunpack.c.l.b16 %v1247
      %v1256 = vunpack.c.h.b16 %v1247
      %v1257 = vunpack.c.l.b16 %v1248
      %v1258 = vunpack.c.h.b16 %v1248
      %v1259 = vunpack.c.l.b16 %v1249
      %v1260 = vunpack.c.h.b16 %v1249
      %v1261 = vunpack.c.l.b16 %v1250
      %v1262 = vunpack.c.h.b16 %v1250
      %v1263 = vpack.c.b16 %v1255, %v1255
      %v1264 = vpack.c.b16 %v1256, %v1256
      %v1265 = vpack.c.b16 %v1257, %v1257
      %v1266 = vpack.c.b16 %v1258, %v1258
      %v1267 = vpack.c.b16 %v1259, %v1259
      %v1268 = vpack.c.b16 %v1260, %v1260
      %v1269 = vpack.c.b16 %v1261, %v1261
      %v1270 = vpack.c.b16 %v1262, %v1262
      %vm1279 = vcmask 125952
      %1280 = vst.msk [vmem:[%s204] sm:$0xf] %vm1279, %v1263
      %1281 = vst.msk [vmem:[%s204 + $0x4] sm:$0xf] %vm1279, %v1264
      %1282 = vst.msk [vmem:[%s204 + $0x8] sm:$0xf] %vm1279, %v1265
      %1283 = vst.msk [vmem:[%s204 + $0xc] sm:$0xf] %vm1279, %v1266
      %1284 = vst.msk [vmem:[%s204 + $0x10] sm:$0xf] %vm1279, %v1267
      %1285 = vst.msk [vmem:[%s204 + $0x14] sm:$0xf] %vm1279, %v1268
      %1286 = vst.msk [vmem:[%s204 + $0x18] sm:$0xf] %vm1279, %v1269
      %1287 = vst.msk [vmem:[%s204 + $0x1c] sm:$0xf] %vm1279, %v1270
      %v1289 = vrot.slane %v1244, 7
      %vm1291 = vcmask 1040384
      %v1292 = vsel %vm1291, %v1166, %v1289
      %vm1293 = vcmask 123904
      %1294 = vst.msk [vmem:[%s208] sm:$0x3] %vm1293, %v1292
      %p1295 = scmp.lt.s32.totalorder %s16, 1
      %s1296 = scalar_select %p1295, %s16, 1
      %s1297 = smul.addr %s1296, 8
      %s1298 = smul.addr %s1297, 4
      %s1299 = scalar_lea.vmem %s3, %s1298
      %p1300 = scmp.lt.s32.totalorder %s16, 1
      %s1301 = scalar_select %p1300, %s16, 1
      %s1302 = smul.addr %s1301, 2
      %s1303 = scalar_lea.vmem %s4, %s1302
      // Predicated region
      $region33: #{downsampler_block_forward.2} parent=31 // pred_check
        %p1304 = pneg %p102
      $region34: #{downsampler_block_forward.2} parent=31 // pred_check_branch
        %1306 = sbr.rel (%p1304) target = $region36
      $region35: #{downsampler_block_forward.2} parent=31 // pred_region
        _
      $region36: #{downsampler_block_forward.2} parent=31 // pred_fallthru
        _
      // Predicated region
      $region37: #{downsampler_block_forward.2} parent=31 // pred_check
        %p1307 = pneg %p128
      $region38: #{downsampler_block_forward.2} parent=31 // pred_check_branch
        %1309 = sbr.rel (%p1307) target = $region40
      $region39: #{downsampler_block_forward.2} parent=31 // pred_region
        _
      $region40: #{downsampler_block_forward.2} parent=31 // pred_fallthru
        _
    $region32: #{downsampler_block_forward.2} parent=5 // pred_fallthru
      _
    %p1310 = scmp.le.s32.totalorder 2, %s11
    // Predicated region
    $region41: #{downsampler_block_forward.2} parent=5 // pred_check
      %p1311 = pneg %p1310
    $region42: #{downsampler_block_forward.2} parent=5 // pred_check_branch
      %1313 = sbr.rel (%p1311) target = $region44
    $region43: #{downsampler_block_forward.2} parent=5 // pred_region
      %s1314 = ssub.s32 %s11, 2
      // Predicated region
      $region45: #{downsampler_block_forward.2} parent=43 // pred_check
        %p1315 = pneg %p108
      $region46: #{downsampler_block_forward.2} parent=43 // pred_check_branch
        %1317 = sbr.rel (%p1315) target = $region48
      $region47: #{downsampler_block_forward.2} parent=43 // pred_region
        %p1318 = scmp.lt.s32.totalorder %s17, 1
        %s1319 = scalar_select %p1318, %s17, 1
        %s1320 = smul.addr %s1319, 8
        %s1321 = smul.addr %s1320, 4
        %s1322 = scalar_lea.vmem %s3, %s1321
      $region48: #{downsampler_block_forward.2} parent=43 // pred_fallthru
        _
      // Predicated region
      $region49: #{downsampler_block_forward.2} parent=43 // pred_check
        %p1323 = pneg %p134
      $region50: #{downsampler_block_forward.2} parent=43 // pred_check_branch
        %1325 = sbr.rel (%p1323) target = $region52
      $region51: #{downsampler_block_forward.2} parent=43 // pred_region
        %p1326 = scmp.lt.s32.totalorder %s17, 1
        %s1327 = scalar_select %p1326, %s17, 1
        %s1328 = smul.addr %s1327, 2
        %s1329 = scalar_lea.vmem %s4, %s1328
      $region52: #{downsampler_block_forward.2} parent=43 // pred_fallthru
        _
    $region44: #{downsampler_block_forward.2} parent=5 // pred_fallthru
      _
  $region6: #{downsampler_block_forward.2} parent=0 // loop_footer
    %s15 = sadd.s32 1, %s11
  $region7: #{downsampler_block_forward.2} parent=0 // loop_footer_branch
    %10 = sbr.rel target = $region3
  $region8: #{downsampler_block_forward.2} parent=0 // loop_exit
    _

</llo_original>
